<compile_context>
chip_gen: v7x
topology: tpu7x:2x2x1
jax: 0.10.0
libtpu: 0.0.40
codegen_flags: <defaults>
</compile_context>

<pallas_src>
import jax
import jax.numpy as jnp
from jax.experimental import pallas as pl
from jax.experimental.pallas import tpu as pltpu

C_IN, C_MID, C_OUT = 480, 112, 672
C_MID_PAD = 128          # pad mid channel so both contraction dims are lane-dense
C_OUT_TILE = 168         # 672 / 4 -> 4 pipelined output tiles
GRID = C_OUT // C_OUT_TILE
BN_EPS = 1e-5


def _fused_kernel(x_ref, gate_ref, w1_ref, gamma_ref, beta_ref, w2_ref, o_ref, ybn_ref):
    # x_ref:     (C_IN, P)          f32 activations, channel-major
    # gate_ref:  (1, C_IN)          f32 SE gate logits (pre-sigmoid), lane-dense
    # w1_ref:    (C_MID_PAD, C_IN)  bf16 conv2d63 weight (padded rows)
    # gamma_ref: (C_MID_PAD, 1)     f32 BN scale (padded with 0)
    # beta_ref:  (C_MID_PAD, 1)     f32 BN shift (padded with 0)
    # w2_ref:    (C_OUT_TILE, C_MID_PAD) bf16 conv2d64 weight tile (padded cols)
    # o_ref:     (C_OUT_TILE, P)    f32 output tile
    # ybn_ref:   (C_MID_PAD, P)     bf16 VMEM scratch, persists across grid steps

    # Phase 0 (first grid step only): gate-folded matmul1 + BN, cached for all tiles.
    @pl.when(pl.program_id(0) == 0)
    def _():
        g = 1.0 / (1.0 + jnp.exp(-gate_ref[...]))                    # (1, C_IN), EUP
        # Fold per-input-channel SE gate into w1 (mathematically identical).
        w1g = (w1_ref[...].astype(jnp.float32) * g).astype(jnp.bfloat16)
        xb = x_ref[...].astype(jnp.bfloat16)                         # (C_IN, P)

        # conv2d63: 1x1 conv -> bf16 MXU matmul, f32 accumulation.
        y = jnp.dot(w1g, xb, preferred_element_type=jnp.float32)     # (C_MID_PAD, P)

        # batchnorm2d37 (train-mode, biased variance over P = N*H*W), f32 stats.
        p = y.shape[1]
        inv_p = 1.0 / p
        s = jnp.sum(y, axis=1, keepdims=True)                        # (C_MID_PAD, 1)
        ss = jnp.sum(y * y, axis=1, keepdims=True)                   # (C_MID_PAD, 1)
        mean = s * inv_p
        var = jnp.maximum(ss * inv_p - mean * mean, 0.0)
        scale = jax.lax.rsqrt(var + BN_EPS) * gamma_ref[...]         # (C_MID_PAD, 1)
        shift = beta_ref[...] - mean * scale                         # fused affine
        ybn_ref[...] = (y * scale + shift).astype(jnp.bfloat16)

    # conv2d64 tile: bf16 MXU matmul, f32 accumulation -> (C_OUT_TILE, P).
    o_ref[...] = jnp.dot(w2_ref[...], ybn_ref[...], preferred_element_type=jnp.float32)


def prepare_params(w1, gamma, beta, w2):
    """One-time weight prep (hoist out of the hot path).

    w1: (C_MID, C_IN), w2: (C_OUT, C_MID), gamma/beta: (C_MID,).
    Pads the mid channel 112 -> 128 (padded rows/cols of the weights and
    gamma=beta=0 keep the padded channels exactly zero through BN) and stores
    the MXU weights as bf16.
    """
    pad = C_MID_PAD - C_MID
    w1p = jnp.pad(w1, ((0, pad), (0, 0))).astype(jnp.bfloat16)       # (128, 480)
    w2p = jnp.pad(w2, ((0, 0), (0, pad))).astype(jnp.bfloat16)       # (672, 128)
    gammap = jnp.pad(gamma, (0, pad)).reshape(C_MID_PAD, 1).astype(jnp.float32)
    betap = jnp.pad(beta, (0, pad)).reshape(C_MID_PAD, 1).astype(jnp.float32)
    return w1p, gammap, betap, w2p


def fused_se_conv_bn_conv(x181, x185, w1p, gammap, betap, w2p):
    """x181: (1, C_IN, H, W), x185: (1, C_IN, 1, 1), pre-padded params from
    prepare_params. Returns (1, C_OUT, H, W) float32."""
    n, c, h, w_ = x181.shape
    assert c == C_IN
    # TODO(synk): N>1 needs a batch grid axis (NCHW -> (C, N*H*W) isn't a pure reshape).
    assert n == 1, "channel-major fast path assumes N == 1"
    p = h * w_

    # Pure reshapes (no transposes) thanks to N=1 channel-major layout.
    x2d = x181.reshape(C_IN, p)
    gate2d = x185.reshape(1, C_IN)

    cost = pl.CostEstimate(
        flops=2 * (C_MID_PAD * C_IN * p + C_OUT * C_MID_PAD * p),
        bytes_accessed=(x2d.size * 4 + gate2d.size * 4 + w1p.size * 2
                        + w2p.size * 2 + 2 * C_MID_PAD * 4 + C_OUT * p * 4),
        transcendentals=C_IN + C_MID_PAD,
    )

    out2d = pl.pallas_call(
        _fused_kernel,
        out_shape=jax.ShapeDtypeStruct((C_OUT, p), jnp.float32),
        grid_spec=pltpu.PrefetchScalarGridSpec(
            num_scalar_prefetch=0,
            grid=(GRID,),
            in_specs=[
                pl.BlockSpec((C_IN, p), lambda i: (0, 0)),             # x, resident
                pl.BlockSpec((1, C_IN), lambda i: (0, 0)),             # gate, resident
                pl.BlockSpec((C_MID_PAD, C_IN), lambda i: (0, 0)),     # w1, resident
                pl.BlockSpec((C_MID_PAD, 1), lambda i: (0, 0)),        # gamma
                pl.BlockSpec((C_MID_PAD, 1), lambda i: (0, 0)),        # beta
                pl.BlockSpec((C_OUT_TILE, C_MID_PAD), lambda i: (i, 0)),  # w2 tile
            ],
            out_specs=pl.BlockSpec((C_OUT_TILE, p), lambda i: (i, 0)),
            scratch_shapes=[pltpu.VMEM((C_MID_PAD, p), jnp.bfloat16)],
        ),
        compiler_params=pltpu.CompilerParams(
            dimension_semantics=("arbitrary",),   # scratch carried across steps
        ),
        cost_estimate=cost,
    )(x2d, gate2d, w1p, gammap, betap, w2p)

    # (C_OUT, P) -> NCHW, pure reshape.
    return out2d.reshape(1, C_OUT, h, w_)


def _reference(x181, x185, w1, gamma, beta, w2):
    """Pure-JAX f32 reference of the PyTorch forward (train-mode BN)."""
    n, c, h, w_ = x181.shape
    xs = x181 * jax.nn.sigmoid(x185)
    x2d = jnp.transpose(xs, (0, 2, 3, 1)).reshape(-1, C_IN)
    y = x2d @ w1.T                                   # (P, C_MID)
    mean = jnp.mean(y, axis=0, keepdims=True)
    var = jnp.mean((y - mean) ** 2, axis=0, keepdims=True)
    y_bn = (y - mean) / jnp.sqrt(var + BN_EPS) * gamma.reshape(1, -1) + beta.reshape(1, -1)
    z = y_bn @ w2.T                                  # (P, C_OUT)
    return jnp.transpose(z.reshape(n, h, w_, C_OUT), (0, 3, 1, 2))


if __name__ == "__main__":
    key = jax.random.PRNGKey(0)
    k_x, k_g, k_w1, k_w2, k_gm, k_bt = jax.random.split(key, 6)

    N, H, W = 1, 14, 14
    x181 = jax.random.normal(k_x, (N, C_IN, H, W), dtype=jnp.float32)
    x185 = jax.random.normal(k_g, (N, C_IN, 1, 1), dtype=jnp.float32)

    # Synthetic params, torch layouts:
    # conv2d63.weight: (112, 480, 1, 1) -> (112, 480)
    w1 = jax.random.normal(k_w1, (C_MID, C_IN), dtype=jnp.float32) * (1.0 / C_IN**0.5)
    # conv2d64.weight: (672, 112, 1, 1) -> (672, 112)
    w2 = jax.random.normal(k_w2, (C_OUT, C_MID), dtype=jnp.float32) * (1.0 / C_MID**0.5)
    # batchnorm2d37 affine params
    gamma = 1.0 + 0.1 * jax.random.normal(k_gm, (C_MID,), dtype=jnp.float32)
    beta = 0.1 * jax.random.normal(k_bt, (C_MID,), dtype=jnp.float32)

    # One-time weight prep (outside the hot path).
    w1p, gammap, betap, w2p = prepare_params(w1, gamma, beta, w2)

    out = fused_se_conv_bn_conv(x181, x185, w1p, gammap, betap, w2p)
    out = jax.block_until_ready(out)

    ref = _reference(x181, x185, w1, gamma, beta, w2)
    assert out.shape == (N, C_OUT, H, W)
    # bf16 MXU operands (f32 accumulation) -> tolerance loosened vs pure-f32 reference.
    assert jnp.allclose(out, ref, atol=5e-2, rtol=5e-2), "mismatch vs reference"

    print("KERNEL_OK")
</pallas_src>

<mosaic_0001>
module attributes {stable_mosaic.version = 11 : i64} {
  func.func @_fused_kernel(%arg0: i32, %arg1: memref<480x196xf32, #tpu.memory_space<vmem>>, %arg2: memref<1x480xf32, #tpu.memory_space<vmem>>, %arg3: memref<128x480xbf16, #tpu.memory_space<vmem>>, %arg4: memref<128x1xf32, #tpu.memory_space<vmem>>, %arg5: memref<128x1xf32, #tpu.memory_space<vmem>>, %arg6: memref<168x128xbf16, #tpu.memory_space<vmem>>, %arg7: memref<168x196xf32, #tpu.memory_space<vmem>>, %arg8: memref<128x196xbf16, #tpu.memory_space<vmem>>) attributes {dimension_semantics = [#tpu.dimension_semantics<arbitrary>], iteration_bounds = array<i64: 4>, scalar_prefetch = 0 : i64, scratch_operands = 1 : i64, tpu.core_type = #tpu.core_type<tc>, window_params = [{pipeline_mode = #tpu.pipeline_mode<synchronous>, transform_indices = @transform_0, window_bounds = array<i64: 480, 196>}, {pipeline_mode = #tpu.pipeline_mode<synchronous>, transform_indices = @transform_1, window_bounds = array<i64: 1, 480>}, {pipeline_mode = #tpu.pipeline_mode<synchronous>, transform_indices = @transform_2, window_bounds = array<i64: 128, 480>}, {pipeline_mode = #tpu.pipeline_mode<synchronous>, transform_indices = @transform_3, window_bounds = array<i64: 128, 1>}, {pipeline_mode = #tpu.pipeline_mode<synchronous>, transform_indices = @transform_4, window_bounds = array<i64: 128, 1>}, {transform_indices = @transform_5, window_bounds = array<i64: 168, 128>}, {transform_indices = @transform_6, window_bounds = array<i64: 168, 196>}]} {
    %c0_i32 = arith.constant 0 : i32
    %0 = arith.cmpi eq, %arg0, %c0_i32 : i32
    %1 = arith.extui %0 : i1 to i32
    %c0_i32_0 = arith.constant 0 : i32
    %2 = arith.cmpi ne, %1, %c0_i32_0 : i32
    scf.if %2 {
      %c0_6 = arith.constant 0 : index
      %c0_7 = arith.constant 0 : index
      %7 = vector.load %arg2[%c0_6, %c0_7] : memref<1x480xf32, #tpu.memory_space<vmem>>, vector<1x480xf32>
      %cst_8 = arith.constant 0.000000e+00 : f32
      %8 = vector.broadcast %cst_8 : f32 to vector<1x480xf32>
      %9 = arith.subf %8, %7 : vector<1x480xf32>
      %10 = math.exp %9 : vector<1x480xf32>
      %cst_9 = arith.constant 1.000000e+00 : f32
      %11 = vector.broadcast %cst_9 : f32 to vector<1x480xf32>
      %12 = arith.addf %11, %10 : vector<1x480xf32>
      %cst_10 = arith.constant 1.000000e+00 : f32
      %13 = vector.broadcast %cst_10 : f32 to vector<1x480xf32>
      %14 = arith.divf %13, %12 : vector<1x480xf32>
      %c0_11 = arith.constant 0 : index
      %c0_12 = arith.constant 0 : index
      %15 = vector.load %arg3[%c0_11, %c0_12] : memref<128x480xbf16, #tpu.memory_space<vmem>>, vector<128x480xbf16>
      %16 = arith.extf %15 : vector<128x480xbf16> to vector<128x480xf32>
      %17 = vector.broadcast %14 : vector<1x480xf32> to vector<128x480xf32>
      %18 = arith.mulf %16, %17 : vector<128x480xf32>
      %19 = arith.truncf %18 : vector<128x480xf32> to vector<128x480xbf16>
      %c0_13 = arith.constant 0 : index
      %c0_14 = arith.constant 0 : index
      %20 = vector.load %arg1[%c0_13, %c0_14] : memref<480x196xf32, #tpu.memory_space<vmem>>, vector<480x196xf32>
      %21 = arith.truncf %20 : vector<480x196xf32> to vector<480x196xbf16>
      %cst_15 = arith.constant dense<0.000000e+00> : vector<128x196xf32>
      %22 = tpu.matmul %19, %21, %cst_15 {dimension_numbers = #tpu.dot_dimension_numbers<[1], [0], [0], [1], [0, 0, 1, 1], [], []>} : vector<128x480xbf16>, vector<480x196xbf16>, vector<128x196xf32> -> vector<128x196xf32>
      %cst_16 = arith.constant dense<0.000000e+00> : vector<128xf32>
      %23 = vector.multi_reduction <add>, %22, %cst_16 [1] : vector<128x196xf32> to vector<128xf32>
      %24 = vector.shape_cast %23 : vector<128xf32> to vector<128x1xf32>
      %25 = arith.mulf %22, %22 : vector<128x196xf32>
      %cst_17 = arith.constant dense<0.000000e+00> : vector<128xf32>
      %26 = vector.multi_reduction <add>, %25, %cst_17 [1] : vector<128x196xf32> to vector<128xf32>
      %27 = vector.shape_cast %26 : vector<128xf32> to vector<128x1xf32>
      %cst_18 = arith.constant 0.00510204071 : f32
      %28 = vector.broadcast %cst_18 : f32 to vector<128x1xf32>
      %29 = arith.mulf %24, %28 : vector<128x1xf32>
      %cst_19 = arith.constant 0.00510204071 : f32
      %30 = vector.broadcast %cst_19 : f32 to vector<128x1xf32>
      %31 = arith.mulf %27, %30 : vector<128x1xf32>
      %32 = arith.mulf %29, %29 : vector<128x1xf32>
      %33 = arith.subf %31, %32 : vector<128x1xf32>
      %cst_20 = arith.constant 0.000000e+00 : f32
      %34 = vector.broadcast %cst_20 : f32 to vector<128x1xf32>
      %35 = arith.maximumf %33, %34 : vector<128x1xf32>
      %cst_21 = arith.constant 9.99999974E-6 : f32
      %36 = vector.broadcast %cst_21 : f32 to vector<128x1xf32>
      %37 = arith.addf %35, %36 : vector<128x1xf32>
      %38 = math.rsqrt %37 : vector<128x1xf32>
      %c0_22 = arith.constant 0 : index
      %c0_23 = arith.constant 0 : index
      %39 = vector.load %arg4[%c0_22, %c0_23] : memref<128x1xf32, #tpu.memory_space<vmem>>, vector<128x1xf32>
      %40 = arith.mulf %38, %39 : vector<128x1xf32>
      %c0_24 = arith.constant 0 : index
      %c0_25 = arith.constant 0 : index
      %41 = vector.load %arg5[%c0_24, %c0_25] : memref<128x1xf32, #tpu.memory_space<vmem>>, vector<128x1xf32>
      %42 = arith.mulf %29, %40 : vector<128x1xf32>
      %43 = arith.subf %41, %42 : vector<128x1xf32>
      %44 = vector.broadcast %40 : vector<128x1xf32> to vector<128x196xf32>
      %45 = arith.mulf %22, %44 : vector<128x196xf32>
      %46 = vector.broadcast %43 : vector<128x1xf32> to vector<128x196xf32>
      %47 = arith.addf %45, %46 : vector<128x196xf32>
      %48 = arith.truncf %47 : vector<128x196xf32> to vector<128x196xbf16>
      %c0_26 = arith.constant 0 : index
      %c0_27 = arith.constant 0 : index
      %49 = vector.load %arg8[%c0_26, %c0_27] : memref<128x196xbf16, #tpu.memory_space<vmem>>, vector<128x196xbf16>
      tpu.vector_store %arg8[%c0_26, %c0_27], %48 {strides = array<i32>} : memref<128x196xbf16, #tpu.memory_space<vmem>>, vector<128x196xbf16>,
    } else {
    }
    %c0 = arith.constant 0 : index
    %c0_1 = arith.constant 0 : index
    %3 = vector.load %arg6[%c0, %c0_1] : memref<168x128xbf16, #tpu.memory_space<vmem>>, vector<168x128xbf16>
    %c0_2 = arith.constant 0 : index
    %c0_3 = arith.constant 0 : index
    %4 = vector.load %arg8[%c0_2, %c0_3] : memref<128x196xbf16, #tpu.memory_space<vmem>>, vector<128x196xbf16>
    %cst = arith.constant dense<0.000000e+00> : vector<168x196xf32>
    %5 = tpu.matmul %3, %4, %cst {dimension_numbers = #tpu.dot_dimension_numbers<[1], [0], [0], [1], [0, 0, 1, 1], [], []>} : vector<168x128xbf16>, vector<128x196xbf16>, vector<168x196xf32> -> vector<168x196xf32>
    %c0_4 = arith.constant 0 : index
    %c0_5 = arith.constant 0 : index
    %6 = vector.load %arg7[%c0_4, %c0_5] : memref<168x196xf32, #tpu.memory_space<vmem>>, vector<168x196xf32>
    tpu.vector_store %arg7[%c0_4, %c0_5], %5 {strides = array<i32>} : memref<168x196xf32, #tpu.memory_space<vmem>>, vector<168x196xf32>,
    return
  }
  func.func @transform_0(%arg0: i32) -> (i32, i32) {
    %c0_i32 = arith.constant 0 : i32
    %c0_i32_0 = arith.constant 0 : i32
    %c0_i32_1 = arith.constant 0 : i32
    return %c0_i32, %c0_i32_0 : i32, i32
  }
  func.func @transform_1(%arg0: i32) -> (i32, i32) {
    %c0_i32 = arith.constant 0 : i32
    %c0_i32_0 = arith.constant 0 : i32
    %c0_i32_1 = arith.constant 0 : i32
    return %c0_i32, %c0_i32_0 : i32, i32
  }
  func.func @transform_2(%arg0: i32) -> (i32, i32) {
    %c0_i32 = arith.constant 0 : i32
    %c0_i32_0 = arith.constant 0 : i32
    %c0_i32_1 = arith.constant 0 : i32
    return %c0_i32, %c0_i32_0 : i32, i32
  }
  func.func @transform_3(%arg0: i32) -> (i32, i32) {
    %c0_i32 = arith.constant 0 : i32
    %c0_i32_0 = arith.constant 0 : i32
    %c0_i32_1 = arith.constant 0 : i32
    return %c0_i32, %c0_i32_0 : i32, i32
  }
  func.func @transform_4(%arg0: i32) -> (i32, i32) {
    %c0_i32 = arith.constant 0 : i32
    %c0_i32_0 = arith.constant 0 : i32
    %c0_i32_1 = arith.constant 0 : i32
    return %c0_i32, %c0_i32_0 : i32, i32
  }
  func.func @transform_5(%arg0: i32) -> (i32, i32) {
    %c0_i32 = arith.constant 0 : i32
    %c0_i32_0 = arith.constant 0 : i32
    return %arg0, %c0_i32 : i32, i32
  }
  func.func @transform_6(%arg0: i32) -> (i32, i32) {
    %c0_i32 = arith.constant 0 : i32
    %c0_i32_0 = arith.constant 0 : i32
    return %arg0, %c0_i32 : i32, i32
  }
}

</mosaic_0001>

<llo_original>
// kernel: tpu_custom_call.1
$region0: #{tpu_custom_call.1}
  #allocation0 [shape = 'u32[]', space=smem, size = 0x4, offset = 0x4, fixed_abs, tag = 'smem constant byte address 0x4 - core index']
  #allocation1 [shape = 'u32[144,128]{1,0:T(1,128)}', space=vmem, size = 0x12000, scoped, tag = 'internal scratch']
  #allocation2 [shape = 'bf16[128,196]{1,0:T(16,128)(2,1)}', space=vmem, size = 0x10000, scoped, tag = 'scratch operand']
  %s0 = inlined_call_operand.vmem [shape: f32[480,196], index: 0, kind: input, shape index: {}]
  %s1 = inlined_call_operand.vmem [shape: f32[1,480], index: 1, kind: input, shape index: {}]
  %s2 = inlined_call_operand.vmem [shape: bf16[128,480], index: 2, kind: input, shape index: {}]
  %s3 = inlined_call_operand.vmem [shape: f32[128,1], index: 3, kind: input, shape index: {}]
  %s4 = inlined_call_operand.vmem [shape: f32[128,1], index: 4, kind: input, shape index: {}]
  %s5 = inlined_call_operand.vmem [shape: bf16[672,128], index: 5, kind: input, shape index: {}]
  %s6 = inlined_call_operand.vmem [shape: f32[672,196], index: 6, kind: output, shape index: {}]
  %s7 = sld [smem:[#allocation0]]
  $region61: #{tpu_custom_call.1} parent=0
    _
  %s9 = ssub.s32 1, %s7
  %s10 = scalar_select 0, %s9, %s7
  loop: start=0, step=1, limit=6
  $region2: #{tpu_custom_call.1} parent=0 // loop_pre_header
    _
  $region3: #{tpu_custom_call.1} parent=0 // loop_header
    %s12 = sphi 0, %s16
    %p13 = scmp.ge.s32.totalorder %s12, 6
    %s20 = sphi 0, %s20
    %s22 = sphi 0, %s20
    %s23 = sphi 0, %s22
    %s37 = sphi 0, %s23
    %s41 = sphi 0, %s41
    %s43 = sphi 0, %s41
    %s44 = sphi 0, %s43
    %s58 = sphi 0, %s44
    %s62 = sphi 0, %s62
    %s64 = sphi 0, %s62
    %s65 = sphi 0, %s64
    %s79 = sphi 0, %s65
    %s83 = sphi 0, %s83
    %s85 = sphi 0, %s83
    %s86 = sphi 0, %s85
    %s100 = sphi 0, %s86
    %s104 = sphi 0, %s104
    %s106 = sphi 0, %s104
    %s107 = sphi 0, %s106
    %s121 = sphi 0, %s107
    %s127 = sphi 0, %s129
    %s130 = sphi 0, %s127
    %s131 = sphi 0, %s130
    %s147 = sphi 0, %s131
    %s153 = sphi 0, %s155
    %s156 = sphi 0, %s153
    %s157 = sphi 0, %s156
    %s173 = sphi 0, %s157
  $region4: #{tpu_custom_call.1} parent=0 // loop_header_branch
    %15 = sbr.rel (%p13) target = $region8
  $region5: #{tpu_custom_call.1} parent=0 // loop_body
    %s17 = ssub.s32 %s12, 1
    %s18 = ssub.s32 %s12, 2
    %s19 = sadd.s32 %s12, 1
    %s21 = sadd.s32 %s20, 1
    %p24 = scmp.eq.s32.totalorder %s12, 3
    %p25 = scmp.ne.s32.totalorder %s20, %s22
    %p26 = scmp.eq.s32.totalorder %s12, 0
    %p27 = por %p25, %p26
    %p28 = scmp.ne.s32.totalorder %s20, %s22
    %p29 = scmp.eq.s32.totalorder %s17, 3
    %p30 = por %p28, %p29
    %p31 = scmp.ne.s32.totalorder %s22, %s23
    %p32 = scmp.eq.s32.totalorder %s17, 0
    %p33 = por %p31, %p32
    %p34 = scmp.ne.s32.totalorder %s22, %s23
    %p35 = scmp.eq.s32.totalorder %s18, 3
    %p36 = por %p34, %p35
    %p38 = scmp.ne.s32.totalorder %s23, %s37
    %p39 = scmp.eq.s32.totalorder %s18, 0
    %p40 = por %p38, %p39
    %s42 = sadd.s32 %s41, 1
    %p45 = scmp.eq.s32.totalorder %s12, 3
    %p46 = scmp.ne.s32.totalorder %s41, %s43
    %p47 = scmp.eq.s32.totalorder %s12, 0
    %p48 = por %p46, %p47
    %p49 = scmp.ne.s32.totalorder %s41, %s43
    %p50 = scmp.eq.s32.totalorder %s17, 3
    %p51 = por %p49, %p50
    %p52 = scmp.ne.s32.totalorder %s43, %s44
    %p53 = scmp.eq.s32.totalorder %s17, 0
    %p54 = por %p52, %p53
    %p55 = scmp.ne.s32.totalorder %s43, %s44
    %p56 = scmp.eq.s32.totalorder %s18, 3
    %p57 = por %p55, %p56
    %p59 = scmp.ne.s32.totalorder %s44, %s58
    %p60 = scmp.eq.s32.totalorder %s18, 0
    %p61 = por %p59, %p60
    %s63 = sadd.s32 %s62, 1
    %p66 = scmp.eq.s32.totalorder %s12, 3
    %p67 = scmp.ne.s32.totalorder %s62, %s64
    %p68 = scmp.eq.s32.totalorder %s12, 0
    %p69 = por %p67, %p68
    %p70 = scmp.ne.s32.totalorder %s62, %s64
    %p71 = scmp.eq.s32.totalorder %s17, 3
    %p72 = por %p70, %p71
    %p73 = scmp.ne.s32.totalorder %s64, %s65
    %p74 = scmp.eq.s32.totalorder %s17, 0
    %p75 = por %p73, %p74
    %p76 = scmp.ne.s32.totalorder %s64, %s65
    %p77 = scmp.eq.s32.totalorder %s18, 3
    %p78 = por %p76, %p77
    %p80 = scmp.ne.s32.totalorder %s65, %s79
    %p81 = scmp.eq.s32.totalorder %s18, 0
    %p82 = por %p80, %p81
    %s84 = sadd.s32 %s83, 1
    %p87 = scmp.eq.s32.totalorder %s12, 3
    %p88 = scmp.ne.s32.totalorder %s83, %s85
    %p89 = scmp.eq.s32.totalorder %s12, 0
    %p90 = por %p88, %p89
    %p91 = scmp.ne.s32.totalorder %s83, %s85
    %p92 = scmp.eq.s32.totalorder %s17, 3
    %p93 = por %p91, %p92
    %p94 = scmp.ne.s32.totalorder %s85, %s86
    %p95 = scmp.eq.s32.totalorder %s17, 0
    %p96 = por %p94, %p95
    %p97 = scmp.ne.s32.totalorder %s85, %s86
    %p98 = scmp.eq.s32.totalorder %s18, 3
    %p99 = por %p97, %p98
    %p101 = scmp.ne.s32.totalorder %s86, %s100
    %p102 = scmp.eq.s32.totalorder %s18, 0
    %p103 = por %p101, %p102
    %s105 = sadd.s32 %s104, 1
    %p108 = scmp.eq.s32.totalorder %s12, 3
    %p109 = scmp.ne.s32.totalorder %s104, %s106
    %p110 = scmp.eq.s32.totalorder %s12, 0
    %p111 = por %p109, %p110
    %p112 = scmp.ne.s32.totalorder %s104, %s106
    %p113 = scmp.eq.s32.totalorder %s17, 3
    %p114 = por %p112, %p113
    %p115 = scmp.ne.s32.totalorder %s106, %s107
    %p116 = scmp.eq.s32.totalorder %s17, 0
    %p117 = por %p115, %p116
    %p118 = scmp.ne.s32.totalorder %s106, %s107
    %p119 = scmp.eq.s32.totalorder %s18, 3
    %p120 = por %p118, %p119
    %p122 = scmp.ne.s32.totalorder %s107, %s121
    %p123 = scmp.eq.s32.totalorder %s18, 0
    %p124 = por %p122, %p123
    %s125 = ssub.s32 %s12, %s19
    %p126 = scmp.eq.s32.totalorder %s125, 0
    %s128 = sadd.s32 %s127, 1
    %s129 = scalar_select %p126, %s127, %s128
    %p132 = pneg %p126
    %p133 = scmp.eq.s32.totalorder %s12, 3
    %p134 = por %p132, %p133
    %p135 = scmp.ne.s32.totalorder %s127, %s130
    %p136 = scmp.eq.s32.totalorder %s12, 0
    %p137 = por %p135, %p136
    %p138 = scmp.ne.s32.totalorder %s127, %s130
    %p139 = scmp.eq.s32.totalorder %s17, 3
    %p140 = por %p138, %p139
    %p141 = scmp.ne.s32.totalorder %s130, %s131
    %p142 = scmp.eq.s32.totalorder %s17, 0
    %p143 = por %p141, %p142
    %p144 = scmp.ne.s32.totalorder %s130, %s131
    %p145 = scmp.eq.s32.totalorder %s18, 3
    %p146 = por %p144, %p145
    %p148 = scmp.ne.s32.totalorder %s131, %s147
    %p149 = scmp.eq.s32.totalorder %s18, 0
    %p150 = por %p148, %p149
    %s151 = ssub.s32 %s12, %s19
    %p152 = scmp.eq.s32.totalorder %s151, 0
    %s154 = sadd.s32 %s153, 1
    %s155 = scalar_select %p152, %s153, %s154
    %p158 = pneg %p152
    %p159 = scmp.eq.s32.totalorder %s12, 3
    %p160 = por %p158, %p159
    %p161 = scmp.ne.s32.totalorder %s153, %s156
    %p162 = scmp.eq.s32.totalorder %s12, 0
    %p163 = por %p161, %p162
    %p164 = scmp.ne.s32.totalorder %s153, %s156
    %p165 = scmp.eq.s32.totalorder %s17, 3
    %p166 = por %p164, %p165
    %p167 = scmp.ne.s32.totalorder %s156, %s157
    %p168 = scmp.eq.s32.totalorder %s17, 0
    %p169 = por %p167, %p168
    %p170 = scmp.ne.s32.totalorder %s156, %s157
    %p171 = scmp.eq.s32.totalorder %s18, 3
    %p172 = por %p170, %p171
    %p174 = scmp.ne.s32.totalorder %s157, %s173
    %p175 = scmp.eq.s32.totalorder %s18, 0
    %p176 = por %p174, %p175
    %p177 = scmp.le.s32.totalorder 1, %s12
    %p178 = scmp.lt.s32.totalorder %s12, 5
    %p179 = pnand %p177, %p178
    %p180 = pneg %p179
    // Predicated region
    $region9: #{tpu_custom_call.1} parent=5 // pred_check
      _
    $region10: #{tpu_custom_call.1} parent=5 // pred_check_branch
      %182 = sbr.rel (%p179) target = $region12
    $region11: #{tpu_custom_call.1} parent=5 // pred_region
      %s183 = ssub.s32 %s12, 1
      // Predicated region
      $region13: #{tpu_custom_call.1} parent=11 // pred_check
        %p184 = pneg %p33
      $region14: #{tpu_custom_call.1} parent=11 // pred_check_branch
        %186 = sbr.rel (%p184) target = $region16
      $region15: #{tpu_custom_call.1} parent=11 // pred_region
        _
      $region16: #{tpu_custom_call.1} parent=11 // pred_fallthru
        _
      // Predicated region
      $region17: #{tpu_custom_call.1} parent=11 // pred_check
        %p187 = pneg %p54
      $region18: #{tpu_custom_call.1} parent=11 // pred_check_branch
        %189 = sbr.rel (%p187) target = $region20
      $region19: #{tpu_custom_call.1} parent=11 // pred_region
        _
      $region20: #{tpu_custom_call.1} parent=11 // pred_fallthru
        _
      // Predicated region
      $region21: #{tpu_custom_call.1} parent=11 // pred_check
        %p190 = pneg %p75
      $region22: #{tpu_custom_call.1} parent=11 // pred_check_branch
        %192 = sbr.rel (%p190) target = $region24
      $region23: #{tpu_custom_call.1} parent=11 // pred_region
        _
      $region24: #{tpu_custom_call.1} parent=11 // pred_fallthru
        _
      // Predicated region
      $region25: #{tpu_custom_call.1} parent=11 // pred_check
        %p193 = pneg %p96
      $region26: #{tpu_custom_call.1} parent=11 // pred_check_branch
        %195 = sbr.rel (%p193) target = $region28
      $region27: #{tpu_custom_call.1} parent=11 // pred_region
        _
      $region28: #{tpu_custom_call.1} parent=11 // pred_fallthru
        _
      // Predicated region
      $region29: #{tpu_custom_call.1} parent=11 // pred_check
        %p196 = pneg %p117
      $region30: #{tpu_custom_call.1} parent=11 // pred_check_branch
        %198 = sbr.rel (%p196) target = $region32
      $region31: #{tpu_custom_call.1} parent=11 // pred_region
        _
      $region32: #{tpu_custom_call.1} parent=11 // pred_fallthru
        _
    $region12: #{tpu_custom_call.1} parent=5 // pred_fallthru
      _
    %p199 = scmp.lt.s32.totalorder %s12, 4
    // Predicated region
    $region33: #{tpu_custom_call.1} parent=5 // pred_check
      %p200 = pneg %p199
    $region34: #{tpu_custom_call.1} parent=5 // pred_check_branch
      %202 = sbr.rel (%p200) target = $region36
    $region35: #{tpu_custom_call.1} parent=5 // pred_region
      // Predicated region
      $region37: #{tpu_custom_call.1} parent=35 // pred_check
        %p203 = pneg %p137
      $region38: #{tpu_custom_call.1} parent=35 // pred_check_branch
        %205 = sbr.rel (%p203) target = $region40
      $region39: #{tpu_custom_call.1} parent=35 // pred_region
        %s206 = smul.u32 21, %s12
        %p207 = scmp.lt.s32.totalorder %s206, 83
        %s208 = scalar_select %p207, %s206, 83
        %s209 = smul.addr %s208, 4
        %s210 = scalar_lea.vmem %s5, %s209
        %s211 = smul.u32 21, %s12
      $region40: #{tpu_custom_call.1} parent=35 // pred_fallthru
        _
    $region36: #{tpu_custom_call.1} parent=5 // pred_fallthru
      _
    %p212 = scmp.le.s32.totalorder 1, %s12
    %p213 = scmp.lt.s32.totalorder %s12, 5
    %p214 = pnand %p212, %p213
    %p215 = pneg %p214
    // Predicated region
    $region41: #{tpu_custom_call.1} parent=5 // pred_check
      _
    $region42: #{tpu_custom_call.1} parent=5 // pred_check_branch
      %217 = sbr.rel (%p214) target = $region44
    $region43: #{tpu_custom_call.1} parent=5 // pred_region
      %s218 = ssub.s32 %s12, 1
      %p219 = pneg %p33
      %p220 = pneg %p30
      %p221 = pneg %p54
      %p222 = pneg %p51
      %p223 = pneg %p75
      %p224 = pneg %p72
      %p225 = pneg %p96
      %p226 = pneg %p93
      %p227 = pneg %p117
      %p228 = pneg %p114
      %s229 = smul.u32 21, %s17
      %p230 = scmp.lt.s32.totalorder %s229, 83
      %s231 = scalar_select %p230, %s229, 83
      %s232 = smul.addr %s231, 4
      %s233 = scalar_lea.vmem %s5, %s232
      %p234 = pneg %p143
      %p235 = pneg %p140
      %p236 = pneg %p169
      %p237 = pneg %p166
      %s238 = smul.u32 21, %s17
      %p239 = scmp.lt.s32.totalorder %s238, 83
      %s240 = scalar_select %p239, %s238, 83
      %s241 = smul.addr %s240, 2
      %s242 = smul.addr %s241, 8
      %s243 = scalar_lea.vmem %s6, %s242
      %s244 = smul.u32 21, %s17
      %p245 = scmp.lt.s32.totalorder %s244, 83
      %s246 = scalar_select %p245, %s244, 83
      %s247 = smul.addr %s246, 4
      %s248 = scalar_lea.vmem %s5, %s247
      %s249 = smul.u32 21, %s17
      %s250 = smul.u32 21, %s17
      %p251 = scmp.lt.s32.totalorder %s250, 83
      %s252 = scalar_select %p251, %s250, 83
      %s253 = smul.addr %s252, 2
      %s254 = smul.addr %s253, 8
      %s255 = scalar_lea.vmem %s6, %s254
      %s256 = smul.u32 21, %s17
      %p258 = scmp.eq.s32.totalorder %s17, 0
      // Predicated region
      $region45: #{tpu_custom_call.1} parent=43 // pred_check
        %p259 = pneg %p258
      $region46: #{tpu_custom_call.1} parent=43 // pred_check_branch
        %261 = sbr.rel (%p259) target = $region48
      $region47: #{tpu_custom_call.1} parent=43 // pred_region
        %v262 = vld [vmem:[%s1] sm:$0xf]
        %v263 = vsub.f32 0.0, %v262
        %v264 = vmul.f32 %v263, 1.442695
        %v265 = vpow.pop %v264
        %v266 = vadd.f32 %v265, 1.0
        %v267 = vrcp.pop %v266
        %v268 = vmul.f32 1.0, %v267
        %v269 = vld [vmem:[%s2] sm:$0xff]
        %v270 = vld [vmem:[%s2 + $0x8] sm:$0xff]
        %v271 = vld [vmem:[%s2 + $0x10] sm:$0xff]
        %v272 = vld [vmem:[%s2 + $0x18] sm:$0xff]
        %v273 = vld [vmem:[%s2 + $0x20] sm:$0xff]
        %v274 = vld [vmem:[%s2 + $0x28] sm:$0xff]
        %v275 = vld [vmem:[%s2 + $0x30] sm:$0xff]
        %v276 = vld [vmem:[%s2 + $0x38] sm:$0xff]
        %v277 = vld [vmem:[%s2 + $0x40] sm:$0xff]
        %v278 = vld [vmem:[%s2 + $0x48] sm:$0xff]
        %v279 = vld [vmem:[%s2 + $0x50] sm:$0xff]
        %v280 = vld [vmem:[%s2 + $0x58] sm:$0xff]
        %v281 = vld [vmem:[%s2 + $0x60] sm:$0xff]
        %v282 = vld [vmem:[%s2 + $0x68] sm:$0xff]
        %v283 = vld [vmem:[%s2 + $0x70] sm:$0xff]
        %v284 = vld [vmem:[%s2 + $0x78] sm:$0xff]
        %v285 = vld [vmem:[%s2 + $0x80] sm:$0xff]
        %v286 = vld [vmem:[%s2 + $0x88] sm:$0xff]
        %v287 = vld [vmem:[%s2 + $0x90] sm:$0xff]
        %v288 = vld [vmem:[%s2 + $0x98] sm:$0xff]
        %v289 = vld [vmem:[%s2 + $0xa0] sm:$0xff]
        %v290 = vld [vmem:[%s2 + $0xa8] sm:$0xff]
        %v291 = vld [vmem:[%s2 + $0xb0] sm:$0xff]
        %v292 = vld [vmem:[%s2 + $0xb8] sm:$0xff]
        %v293 = vld [vmem:[%s2 + $0xc0] sm:$0xff]
        %v294 = vld [vmem:[%s2 + $0xc8] sm:$0xff]
        %v295 = vld [vmem:[%s2 + $0xd0] sm:$0xff]
        %v296 = vld [vmem:[%s2 + $0xd8] sm:$0xff]
        %v297 = vld [vmem:[%s2 + $0xe0] sm:$0xff]
        %v298 = vld [vmem:[%s2 + $0xe8] sm:$0xff]
        %v299 = vld [vmem:[%s2 + $0xf0] sm:$0xff]
        %v300 = vld [vmem:[%s2 + $0xf8] sm:$0xff]
        %v301 = vunpack.c.l.bf16 %v269
        %v302 = vunpack.c.h.bf16 %v269
        %v303 = vunpack.c.l.bf16 %v270
        %v304 = vunpack.c.h.bf16 %v270
        %v305 = vunpack.c.l.bf16 %v271
        %v306 = vunpack.c.h.bf16 %v271
        %v307 = vunpack.c.l.bf16 %v272
        %v308 = vunpack.c.h.bf16 %v272
        %v309 = vunpack.c.l.bf16 %v273
        %v310 = vunpack.c.h.bf16 %v273
        %v311 = vunpack.c.l.bf16 %v274
        %v312 = vunpack.c.h.bf16 %v274
        %v313 = vunpack.c.l.bf16 %v275
        %v314 = vunpack.c.h.bf16 %v275
        %v315 = vunpack.c.l.bf16 %v276
        %v316 = vunpack.c.h.bf16 %v276
        %v317 = vunpack.c.l.bf16 %v277
        %v318 = vunpack.c.h.bf16 %v277
        %v319 = vunpack.c.l.bf16 %v278
        %v320 = vunpack.c.h.bf16 %v278
        %v321 = vunpack.c.l.bf16 %v279
        %v322 = vunpack.c.h.bf16 %v279
        %v323 = vunpack.c.l.bf16 %v280
        %v324 = vunpack.c.h.bf16 %v280
        %v325 = vunpack.c.l.bf16 %v281
        %v326 = vunpack.c.h.bf16 %v281
        %v327 = vunpack.c.l.bf16 %v282
        %v328 = vunpack.c.h.bf16 %v282
        %v329 = vunpack.c.l.bf16 %v283
        %v330 = vunpack.c.h.bf16 %v283
        %v331 = vunpack.c.l.bf16 %v284
        %v332 = vunpack.c.h.bf16 %v284
        %v333 = vunpack.c.l.bf16 %v285
        %v334 = vunpack.c.h.bf16 %v285
        %v335 = vunpack.c.l.bf16 %v286
        %v336 = vunpack.c.h.bf16 %v286
        %v337 = vunpack.c.l.bf16 %v287
        %v338 = vunpack.c.h.bf16 %v287
        %v339 = vunpack.c.l.bf16 %v288
        %v340 = vunpack.c.h.bf16 %v288
        %v341 = vunpack.c.l.bf16 %v289
        %v342 = vunpack.c.h.bf16 %v289
        %v343 = vunpack.c.l.bf16 %v290
        %v344 = vunpack.c.h.bf16 %v290
        %v345 = vunpack.c.l.bf16 %v291
        %v346 = vunpack.c.h.bf16 %v291
        %v347 = vunpack.c.l.bf16 %v292
        %v348 = vunpack.c.h.bf16 %v292
        %v349 = vunpack.c.l.bf16 %v293
        %v350 = vunpack.c.h.bf16 %v293
        %v351 = vunpack.c.l.bf16 %v294
        %v352 = vunpack.c.h.bf16 %v294
        %v353 = vunpack.c.l.bf16 %v295
        %v354 = vunpack.c.h.bf16 %v295
        %v355 = vunpack.c.l.bf16 %v296
        %v356 = vunpack.c.h.bf16 %v296
        %v357 = vunpack.c.l.bf16 %v297
        %v358 = vunpack.c.h.bf16 %v297
        %v359 = vunpack.c.l.bf16 %v298
        %v360 = vunpack.c.h.bf16 %v298
        %v361 = vunpack.c.l.bf16 %v299
        %v362 = vunpack.c.h.bf16 %v299
        %v363 = vunpack.c.l.bf16 %v300
        %v364 = vunpack.c.h.bf16 %v300
        %v366 = vlaneseq
        %v367 = vshrl.u32 %v366, 7
        %v368 = vsub.s32 0, %v367
        %v369 = vrot.slane %v268, %v368
        %v370 = vlaneseq
        %v371 = vshrl.u32 %v370, 7
        %v372 = vsub.s32 1, %v371
        %v373 = vrot.slane %v268, %v372
        %v374 = vlaneseq
        %v375 = vshrl.u32 %v374, 7
        %v376 = vsub.s32 2, %v375
        %v377 = vrot.slane %v268, %v376
        %v378 = vlaneseq
        %v379 = vshrl.u32 %v378, 7
        %v380 = vsub.s32 3, %v379
        %v381 = vrot.slane %v268, %v380
        %v386 = vmul.f32 %v301, %v369
        %v387 = vmul.f32 %v302, %v373
        %v388 = vmul.f32 %v303, %v377
        %v389 = vmul.f32 %v304, %v381
        %v390 = vmul.f32 %v305, %v369
        %v391 = vmul.f32 %v306, %v373
        %v392 = vmul.f32 %v307, %v377
        %v393 = vmul.f32 %v308, %v381
        %v394 = vmul.f32 %v309, %v369
        %v395 = vmul.f32 %v310, %v373
        %v396 = vmul.f32 %v311, %v377
        %v397 = vmul.f32 %v312, %v381
        %v398 = vmul.f32 %v313, %v369
        %v399 = vmul.f32 %v314, %v373
        %v400 = vmul.f32 %v315, %v377
        %v401 = vmul.f32 %v316, %v381
        %v402 = vmul.f32 %v317, %v369
        %v403 = vmul.f32 %v318, %v373
        %v404 = vmul.f32 %v319, %v377
        %v405 = vmul.f32 %v320, %v381
        %v406 = vmul.f32 %v321, %v369
        %v407 = vmul.f32 %v322, %v373
        %v408 = vmul.f32 %v323, %v377
        %v409 = vmul.f32 %v324, %v381
        %v410 = vmul.f32 %v325, %v369
        %v411 = vmul.f32 %v326, %v373
        %v412 = vmul.f32 %v327, %v377
        %v413 = vmul.f32 %v328, %v381
        %v414 = vmul.f32 %v329, %v369
        %v415 = vmul.f32 %v330, %v373
        %v416 = vmul.f32 %v331, %v377
        %v417 = vmul.f32 %v332, %v381
        %v418 = vmul.f32 %v333, %v369
        %v419 = vmul.f32 %v334, %v373
        %v420 = vmul.f32 %v335, %v377
        %v421 = vmul.f32 %v336, %v381
        %v422 = vmul.f32 %v337, %v369
        %v423 = vmul.f32 %v338, %v373
        %v424 = vmul.f32 %v339, %v377
        %v425 = vmul.f32 %v340, %v381
        %v426 = vmul.f32 %v341, %v369
        %v427 = vmul.f32 %v342, %v373
        %v428 = vmul.f32 %v343, %v377
        %v429 = vmul.f32 %v344, %v381
        %v430 = vmul.f32 %v345, %v369
        %v431 = vmul.f32 %v346, %v373
        %v432 = vmul.f32 %v347, %v377
        %v433 = vmul.f32 %v348, %v381
        %v434 = vmul.f32 %v349, %v369
        %v435 = vmul.f32 %v350, %v373
        %v436 = vmul.f32 %v351, %v377
        %v437 = vmul.f32 %v352, %v381
        %v438 = vmul.f32 %v353, %v369
        %v439 = vmul.f32 %v354, %v373
        %v440 = vmul.f32 %v355, %v377
        %v441 = vmul.f32 %v356, %v381
        %v442 = vmul.f32 %v357, %v369
        %v443 = vmul.f32 %v358, %v373
        %v444 = vmul.f32 %v359, %v377
        %v445 = vmul.f32 %v360, %v381
        %v446 = vmul.f32 %v361, %v369
        %v447 = vmul.f32 %v362, %v373
        %v448 = vmul.f32 %v363, %v377
        %v449 = vmul.f32 %v364, %v381
        %v450 = vpack.c.bf16 %v390, %v386
        %v451 = vpack.c.bf16 %v391, %v387
        %v452 = vpack.c.bf16 %v392, %v388
        %v453 = vpack.c.bf16 %v393, %v389
        %v454 = vpack.c.bf16 %v398, %v394
        %v455 = vpack.c.bf16 %v399, %v395
        %v456 = vpack.c.bf16 %v400, %v396
        %v457 = vpack.c.bf16 %v401, %v397
        %v458 = vpack.c.bf16 %v406, %v402
        %v459 = vpack.c.bf16 %v407, %v403
        %v460 = vpack.c.bf16 %v408, %v404
        %v461 = vpack.c.bf16 %v409, %v405
        %v462 = vpack.c.bf16 %v414, %v410
        %v463 = vpack.c.bf16 %v415, %v411
        %v464 = vpack.c.bf16 %v416, %v412
        %v465 = vpack.c.bf16 %v417, %v413
        %v466 = vpack.c.bf16 %v422, %v418
        %v467 = vpack.c.bf16 %v423, %v419
        %v468 = vpack.c.bf16 %v424, %v420
        %v469 = vpack.c.bf16 %v425, %v421
        %v470 = vpack.c.bf16 %v430, %v426
        %v471 = vpack.c.bf16 %v431, %v427
        %v472 = vpack.c.bf16 %v432, %v428
        %v473 = vpack.c.bf16 %v433, %v429
        %v474 = vpack.c.bf16 %v438, %v434
        %v475 = vpack.c.bf16 %v439, %v435
        %v476 = vpack.c.bf16 %v440, %v436
        %v477 = vpack.c.bf16 %v441, %v437
        %v478 = vpack.c.bf16 %v446, %v442
        %v479 = vpack.c.bf16 %v447, %v443
        %v480 = vpack.c.bf16 %v448, %v444
        %v481 = vpack.c.bf16 %v449, %v445
        %v482 = vld [vmem:[%s0] sm:$0xff]
        %v483 = vld [vmem:[%s0 + $0x8] sm:$0xff]
        %v484 = vld [vmem:[%s0 + $0x10] sm:$0xff]
        %v485 = vld [vmem:[%s0 + $0x18] sm:$0xff]
        %v486 = vld [vmem:[%s0 + $0x20] sm:$0xff]
        %v487 = vld [vmem:[%s0 + $0x28] sm:$0xff]
        %v488 = vld [vmem:[%s0 + $0x30] sm:$0xff]
        %v489 = vld [vmem:[%s0 + $0x38] sm:$0xff]
        %v490 = vld [vmem:[%s0 + $0x40] sm:$0xff]
        %v491 = vld [vmem:[%s0 + $0x48] sm:$0xff]
        %v492 = vld [vmem:[%s0 + $0x50] sm:$0xff]
        %v493 = vld [vmem:[%s0 + $0x58] sm:$0xff]
        %v494 = vld [vmem:[%s0 + $0x60] sm:$0xff]
        %v495 = vld [vmem:[%s0 + $0x68] sm:$0xff]
        %v496 = vld [vmem:[%s0 + $0x70] sm:$0xff]
        %v497 = vld [vmem:[%s0 + $0x78] sm:$0xff]
        %v498 = vld [vmem:[%s0 + $0x80] sm:$0xff]
        %v499 = vld [vmem:[%s0 + $0x88] sm:$0xff]
        %v500 = vld [vmem:[%s0 + $0x90] sm:$0xff]
        %v501 = vld [vmem:[%s0 + $0x98] sm:$0xff]
        %v502 = vld [vmem:[%s0 + $0xa0] sm:$0xff]
        %v503 = vld [vmem:[%s0 + $0xa8] sm:$0xff]
        %v504 = vld [vmem:[%s0 + $0xb0] sm:$0xff]
        %v505 = vld [vmem:[%s0 + $0xb8] sm:$0xff]
        %v506 = vld [vmem:[%s0 + $0xc0] sm:$0xff]
        %v507 = vld [vmem:[%s0 + $0xc8] sm:$0xff]
        %v508 = vld [vmem:[%s0 + $0xd0] sm:$0xff]
        %v509 = vld [vmem:[%s0 + $0xd8] sm:$0xff]
        %v510 = vld [vmem:[%s0 + $0xe0] sm:$0xff]
        %v511 = vld [vmem:[%s0 + $0xe8] sm:$0xff]
        %v512 = vld [vmem:[%s0 + $0xf0] sm:$0xff]
        %v513 = vld [vmem:[%s0 + $0xf8] sm:$0xff]
        %v514 = vld [vmem:[%s0 + $0x100] sm:$0xff]
        %v515 = vld [vmem:[%s0 + $0x108] sm:$0xff]
        %v516 = vld [vmem:[%s0 + $0x110] sm:$0xff]
        %v517 = vld [vmem:[%s0 + $0x118] sm:$0xff]
        %v518 = vld [vmem:[%s0 + $0x120] sm:$0xff]
        %v519 = vld [vmem:[%s0 + $0x128] sm:$0xff]
        %v520 = vld [vmem:[%s0 + $0x130] sm:$0xff]
        %v521 = vld [vmem:[%s0 + $0x138] sm:$0xff]
        %v522 = vld [vmem:[%s0 + $0x140] sm:$0xff]
        %v523 = vld [vmem:[%s0 + $0x148] sm:$0xff]
        %v524 = vld [vmem:[%s0 + $0x150] sm:$0xff]
        %v525 = vld [vmem:[%s0 + $0x158] sm:$0xff]
        %v526 = vld [vmem:[%s0 + $0x160] sm:$0xff]
        %v527 = vld [vmem:[%s0 + $0x168] sm:$0xff]
        %v528 = vld [vmem:[%s0 + $0x170] sm:$0xff]
        %v529 = vld [vmem:[%s0 + $0x178] sm:$0xff]
        %v530 = vld [vmem:[%s0 + $0x180] sm:$0xff]
        %v531 = vld [vmem:[%s0 + $0x188] sm:$0xff]
        %v532 = vld [vmem:[%s0 + $0x190] sm:$0xff]
        %v533 = vld [vmem:[%s0 + $0x198] sm:$0xff]
        %v534 = vld [vmem:[%s0 + $0x1a0] sm:$0xff]
        %v535 = vld [vmem:[%s0 + $0x1a8] sm:$0xff]
        %v536 = vld [vmem:[%s0 + $0x1b0] sm:$0xff]
        %v537 = vld [vmem:[%s0 + $0x1b8] sm:$0xff]
        %v538 = vld [vmem:[%s0 + $0x1c0] sm:$0xff]
        %v539 = vld [vmem:[%s0 + $0x1c8] sm:$0xff]
        %v540 = vld [vmem:[%s0 + $0x1d0] sm:$0xff]
        %v541 = vld [vmem:[%s0 + $0x1d8] sm:$0xff]
        %v542 = vld [vmem:[%s0 + $0x1e0] sm:$0xff]
        %v543 = vld [vmem:[%s0 + $0x1e8] sm:$0xff]
        %v544 = vld [vmem:[%s0 + $0x1f0] sm:$0xff]
        %v545 = vld [vmem:[%s0 + $0x1f8] sm:$0xff]
        %v546 = vld [vmem:[%s0 + $0x200] sm:$0xff]
        %v547 = vld [vmem:[%s0 + $0x208] sm:$0xff]
        %v548 = vld [vmem:[%s0 + $0x210] sm:$0xff]
        %v549 = vld [vmem:[%s0 + $0x218] sm:$0xff]
        %v550 = vld [vmem:[%s0 + $0x220] sm:$0xff]
        %v551 = vld [vmem:[%s0 + $0x228] sm:$0xff]
        %v552 = vld [vmem:[%s0 + $0x230] sm:$0xff]
        %v553 = vld [vmem:[%s0 + $0x238] sm:$0xff]
        %v554 = vld [vmem:[%s0 + $0x240] sm:$0xff]
        %v555 = vld [vmem:[%s0 + $0x248] sm:$0xff]
        %v556 = vld [vmem:[%s0 + $0x250] sm:$0xff]
        %v557 = vld [vmem:[%s0 + $0x258] sm:$0xff]
        %v558 = vld [vmem:[%s0 + $0x260] sm:$0xff]
        %v559 = vld [vmem:[%s0 + $0x268] sm:$0xff]
        %v560 = vld [vmem:[%s0 + $0x270] sm:$0xff]
        %v561 = vld [vmem:[%s0 + $0x278] sm:$0xff]
        %v562 = vld [vmem:[%s0 + $0x280] sm:$0xff]
        %v563 = vld [vmem:[%s0 + $0x288] sm:$0xff]
        %v564 = vld [vmem:[%s0 + $0x290] sm:$0xff]
        %v565 = vld [vmem:[%s0 + $0x298] sm:$0xff]
        %v566 = vld [vmem:[%s0 + $0x2a0] sm:$0xff]
        %v567 = vld [vmem:[%s0 + $0x2a8] sm:$0xff]
        %v568 = vld [vmem:[%s0 + $0x2b0] sm:$0xff]
        %v569 = vld [vmem:[%s0 + $0x2b8] sm:$0xff]
        %v570 = vld [vmem:[%s0 + $0x2c0] sm:$0xff]
        %v571 = vld [vmem:[%s0 + $0x2c8] sm:$0xff]
        %v572 = vld [vmem:[%s0 + $0x2d0] sm:$0xff]
        %v573 = vld [vmem:[%s0 + $0x2d8] sm:$0xff]
        %v574 = vld [vmem:[%s0 + $0x2e0] sm:$0xff]
        %v575 = vld [vmem:[%s0 + $0x2e8] sm:$0xff]
        %v576 = vld [vmem:[%s0 + $0x2f0] sm:$0xff]
        %v577 = vld [vmem:[%s0 + $0x2f8] sm:$0xff]
        %v578 = vld [vmem:[%s0 + $0x300] sm:$0xff]
        %v579 = vld [vmem:[%s0 + $0x308] sm:$0xff]
        %v580 = vld [vmem:[%s0 + $0x310] sm:$0xff]
        %v581 = vld [vmem:[%s0 + $0x318] sm:$0xff]
        %v582 = vld [vmem:[%s0 + $0x320] sm:$0xff]
        %v583 = vld [vmem:[%s0 + $0x328] sm:$0xff]
        %v584 = vld [vmem:[%s0 + $0x330] sm:$0xff]
        %v585 = vld [vmem:[%s0 + $0x338] sm:$0xff]
        %v586 = vld [vmem:[%s0 + $0x340] sm:$0xff]
        %v587 = vld [vmem:[%s0 + $0x348] sm:$0xff]
        %v588 = vld [vmem:[%s0 + $0x350] sm:$0xff]
        %v589 = vld [vmem:[%s0 + $0x358] sm:$0xff]
        %v590 = vld [vmem:[%s0 + $0x360] sm:$0xff]
        %v591 = vld [vmem:[%s0 + $0x368] sm:$0xff]
        %v592 = vld [vmem:[%s0 + $0x370] sm:$0xff]
        %v593 = vld [vmem:[%s0 + $0x378] sm:$0xff]
        %v594 = vld [vmem:[%s0 + $0x380] sm:$0xff]
        %v595 = vld [vmem:[%s0 + $0x388] sm:$0xff]
        %v596 = vld [vmem:[%s0 + $0x390] sm:$0xff]
        %v597 = vld [vmem:[%s0 + $0x398] sm:$0xff]
        %v598 = vld [vmem:[%s0 + $0x3a0] sm:$0xff]
        %v599 = vld [vmem:[%s0 + $0x3a8] sm:$0xff]
        %v600 = vld [vmem:[%s0 + $0x3b0] sm:$0xff]
        %v601 = vld [vmem:[%s0 + $0x3b8] sm:$0xff]
        %v602 = vpack.c.bf16 %v484, %v482
        %v603 = vpack.c.bf16 %v485, %v483
        %v604 = vpack.c.bf16 %v488, %v486
        %v605 = vpack.c.bf16 %v489, %v487
        %v606 = vpack.c.bf16 %v492, %v490
        %v607 = vpack.c.bf16 %v493, %v491
        %v608 = vpack.c.bf16 %v496, %v494
        %v609 = vpack.c.bf16 %v497, %v495
        %v610 = vpack.c.bf16 %v500, %v498
        %v611 = vpack.c.bf16 %v501, %v499
        %v612 = vpack.c.bf16 %v504, %v502
        %v613 = vpack.c.bf16 %v505, %v503
        %v614 = vpack.c.bf16 %v508, %v506
        %v615 = vpack.c.bf16 %v509, %v507
        %v616 = vpack.c.bf16 %v512, %v510
        %v617 = vpack.c.bf16 %v513, %v511
        %v618 = vpack.c.bf16 %v516, %v514
        %v619 = vpack.c.bf16 %v517, %v515
        %v620 = vpack.c.bf16 %v520, %v518
        %v621 = vpack.c.bf16 %v521, %v519
        %v622 = vpack.c.bf16 %v524, %v522
        %v623 = vpack.c.bf16 %v525, %v523
        %v624 = vpack.c.bf16 %v528, %v526
        %v625 = vpack.c.bf16 %v529, %v527
        %v626 = vpack.c.bf16 %v532, %v530
        %v627 = vpack.c.bf16 %v533, %v531
        %v628 = vpack.c.bf16 %v536, %v534
        %v629 = vpack.c.bf16 %v537, %v535
        %v630 = vpack.c.bf16 %v540, %v538
        %v631 = vpack.c.bf16 %v541, %v539
        %v632 = vpack.c.bf16 %v544, %v542
        %v633 = vpack.c.bf16 %v545, %v543
        %v634 = vpack.c.bf16 %v548, %v546
        %v635 = vpack.c.bf16 %v549, %v547
        %v636 = vpack.c.bf16 %v552, %v550
        %v637 = vpack.c.bf16 %v553, %v551
        %v638 = vpack.c.bf16 %v556, %v554
        %v639 = vpack.c.bf16 %v557, %v555
        %v640 = vpack.c.bf16 %v560, %v558
        %v641 = vpack.c.bf16 %v561, %v559
        %v642 = vpack.c.bf16 %v564, %v562
        %v643 = vpack.c.bf16 %v565, %v563
        %v644 = vpack.c.bf16 %v568, %v566
        %v645 = vpack.c.bf16 %v569, %v567
        %v646 = vpack.c.bf16 %v572, %v570
        %v647 = vpack.c.bf16 %v573, %v571
        %v648 = vpack.c.bf16 %v576, %v574
        %v649 = vpack.c.bf16 %v577, %v575
        %v650 = vpack.c.bf16 %v580, %v578
        %v651 = vpack.c.bf16 %v581, %v579
        %v652 = vpack.c.bf16 %v584, %v582
        %v653 = vpack.c.bf16 %v585, %v583
        %v654 = vpack.c.bf16 %v588, %v586
        %v655 = vpack.c.bf16 %v589, %v587
        %v656 = vpack.c.bf16 %v592, %v590
        %v657 = vpack.c.bf16 %v593, %v591
        %v658 = vpack.c.bf16 %v596, %v594
        %v659 = vpack.c.bf16 %v597, %v595
        %v660 = vpack.c.bf16 %v600, %v598
        %v661 = vpack.c.bf16 %v601, %v599
        %vm662 = vcmask 785408
        %v664 = vsel %vm662, %v453, 0
        %v667 = vsel %vm662, %v457, 0
        %v670 = vsel %vm662, %v461, 0
        %v673 = vsel %vm662, %v465, 0
        %v676 = vsel %vm662, %v469, 0
        %v679 = vsel %vm662, %v473, 0
        %v682 = vsel %vm662, %v477, 0
        %v685 = vsel %vm662, %v481, 0
        %687 = vmatprep.subr.bf16.mxu0 %v603
        %688 = vmatpush1.bf16.msra.mxu0 %v602
        %689 = vmatprep.subr.bf16.mxu0 %v605
        %690 = vmatpush1.bf16.msra.mxu0 %v604
        %691 = vmatprep.subr.bf16.mxu0 %v607
        %692 = vmatpush1.bf16.msra.mxu0 %v606
        %693 = vmatprep.subr.bf16.mxu0 %v609
        %694 = vmatpush1.bf16.msra.mxu0 %v608
        %695 = vmatprep.subr.bf16.mxu0 %v611
        %696 = vmatpush1.bf16.msra.mxu0 %v610
        %697 = vmatprep.subr.bf16.mxu0 %v613
        %698 = vmatpush1.bf16.msra.mxu0 %v612
        %699 = vmatprep.subr.bf16.mxu0 %v615
        %700 = vmatpush1.bf16.msra.mxu0 %v614
        %701 = vmatprep.subr.bf16.mxu0 %v617
        %702 = vmatpush1.bf16.msra.mxu0 %v616
        %703 = vmatprep.subr.bf16.mxu0 %v619
        %704 = vmatpush1.bf16.msra.mxu0 %v618
        %705 = vmatprep.subr.bf16.mxu0 %v621
        %706 = vmatpush1.bf16.msra.mxu0 %v620
        %707 = vmatprep.subr.bf16.mxu0 %v623
        %708 = vmatpush1.bf16.msra.mxu0 %v622
        %709 = vmatprep.subr.bf16.mxu0 %v625
        %710 = vmatpush1.bf16.msra.mxu0 %v624
        %711 = vmatprep.subr.bf16.mxu0 %v627
        %712 = vmatpush1.bf16.msra.mxu0 %v626
        %713 = vmatprep.subr.bf16.mxu0 %v629
        %714 = vmatpush1.bf16.msra.mxu0 %v628
        %715 = vmatprep.subr.bf16.mxu0 %v631
        %716 = vmatpush1.bf16.msra.mxu0 %v630
        %717 = vmatprep.subr.bf16.mxu0 %v633
        %718 = vmatpush1.bf16.msra.mxu0 %v632
        %719 = vmatprep.mubr.bf16.mxu0 %v451
        %720 = vmatmul.mubr.bf16.gmra.mrb[0].mxu0 %v450
        %v721 = vpop.f32.mrb[0].mxu0
        %v722 = vadd.f32 0.0, %v721
        %v723 = vpop.f32.mrb[0].mxu0
        %v724 = vadd.f32 0.0, %v723
        %v725 = vpop.f32.mrb[0].mxu0
        %v726 = vadd.f32 0.0, %v725
        %v727 = vpop.f32.mrb[0].mxu0
        %v728 = vadd.f32 0.0, %v727
        %729 = vmatprep.mubr.bf16.mxu0 %v455
        %730 = vmatmul.mubr.bf16.gmra.mrb[0].mxu0 %v454
        %v731 = vpop.f32.mrb[0].mxu0
        %v732 = vadd.f32 0.0, %v731
        %v733 = vpop.f32.mrb[0].mxu0
        %v734 = vadd.f32 0.0, %v733
        %v735 = vpop.f32.mrb[0].mxu0
        %v736 = vadd.f32 0.0, %v735
        %v737 = vpop.f32.mrb[0].mxu0
        %v738 = vadd.f32 0.0, %v737
        %739 = vmatprep.mubr.bf16.mxu0 %v459
        %740 = vmatmul.mubr.bf16.gmra.mrb[0].mxu0 %v458
        %v741 = vpop.f32.mrb[0].mxu0
        %v742 = vadd.f32 0.0, %v741
        %v743 = vpop.f32.mrb[0].mxu0
        %v744 = vadd.f32 0.0, %v743
        %v745 = vpop.f32.mrb[0].mxu0
        %v746 = vadd.f32 0.0, %v745
        %v747 = vpop.f32.mrb[0].mxu0
        %v748 = vadd.f32 0.0, %v747
        %749 = vmatprep.mubr.bf16.mxu0 %v463
        %750 = vmatmul.mubr.bf16.gmra.mrb[0].mxu0 %v462
        %v751 = vpop.f32.mrb[0].mxu0
        %v752 = vadd.f32 0.0, %v751
        %v753 = vpop.f32.mrb[0].mxu0
        %v754 = vadd.f32 0.0, %v753
        %v755 = vpop.f32.mrb[0].mxu0
        %v756 = vadd.f32 0.0, %v755
        %v757 = vpop.f32.mrb[0].mxu0
        %v758 = vadd.f32 0.0, %v757
        %759 = vmatprep.mubr.bf16.mxu0 %v467
        %760 = vmatmul.mubr.bf16.gmra.mrb[0].mxu0 %v466
        %v761 = vpop.f32.mrb[0].mxu0
        %v762 = vadd.f32 0.0, %v761
        %v763 = vpop.f32.mrb[0].mxu0
        %v764 = vadd.f32 0.0, %v763
        %v765 = vpop.f32.mrb[0].mxu0
        %v766 = vadd.f32 0.0, %v765
        %v767 = vpop.f32.mrb[0].mxu0
        %v768 = vadd.f32 0.0, %v767
        %769 = vmatprep.mubr.bf16.mxu0 %v471
        %770 = vmatmul.mubr.bf16.gmra.mrb[0].mxu0 %v470
        %v771 = vpop.f32.mrb[0].mxu0
        %v772 = vadd.f32 0.0, %v771
        %v773 = vpop.f32.mrb[0].mxu0
        %v774 = vadd.f32 0.0, %v773
        %v775 = vpop.f32.mrb[0].mxu0
        %v776 = vadd.f32 0.0, %v775
        %v777 = vpop.f32.mrb[0].mxu0
        %v778 = vadd.f32 0.0, %v777
        %779 = vmatprep.mubr.bf16.mxu0 %v475
        %780 = vmatmul.mubr.bf16.gmra.mrb[0].mxu0 %v474
        %v781 = vpop.f32.mrb[0].mxu0
        %v782 = vadd.f32 0.0, %v781
        %v783 = vpop.f32.mrb[0].mxu0
        %v784 = vadd.f32 0.0, %v783
        %v785 = vpop.f32.mrb[0].mxu0
        %v786 = vadd.f32 0.0, %v785
        %v787 = vpop.f32.mrb[0].mxu0
        %v788 = vadd.f32 0.0, %v787
        %789 = vmatprep.mubr.bf16.mxu0 %v479
        %790 = vmatmul.mubr.bf16.gmra.mrb[0].mxu0 %v478
        %v791 = vpop.f32.mrb[0].mxu0
        %v792 = vadd.f32 0.0, %v791
        %v793 = vpop.f32.mrb[0].mxu0
        %v794 = vadd.f32 0.0, %v793
        %v795 = vpop.f32.mrb[0].mxu0
        %v796 = vadd.f32 0.0, %v795
        %v797 = vpop.f32.mrb[0].mxu0
        %v798 = vadd.f32 0.0, %v797
        %799 = vdwg.mxu0
        %800 = vmatprep.subr.bf16.mxu0 %v635
        %801 = vmatpush1.bf16.msra.mxu0 %v634
        %802 = vmatprep.subr.bf16.mxu0 %v637
        %803 = vmatpush1.bf16.msra.mxu0 %v636
        %804 = vmatprep.subr.bf16.mxu0 %v639
        %805 = vmatpush1.bf16.msra.mxu0 %v638
        %806 = vmatprep.subr.bf16.mxu0 %v641
        %807 = vmatpush1.bf16.msra.mxu0 %v640
        %808 = vmatprep.subr.bf16.mxu0 %v643
        %809 = vmatpush1.bf16.msra.mxu0 %v642
        %810 = vmatprep.subr.bf16.mxu0 %v645
        %811 = vmatpush1.bf16.msra.mxu0 %v644
        %812 = vmatprep.subr.bf16.mxu0 %v647
        %813 = vmatpush1.bf16.msra.mxu0 %v646
        %814 = vmatprep.subr.bf16.mxu0 %v649
        %815 = vmatpush1.bf16.msra.mxu0 %v648
        %816 = vmatprep.subr.bf16.mxu0 %v651
        %817 = vmatpush1.bf16.msra.mxu0 %v650
        %818 = vmatprep.subr.bf16.mxu0 %v653
        %819 = vmatpush1.bf16.msra.mxu0 %v652
        %820 = vmatprep.subr.bf16.mxu0 %v655
        %821 = vmatpush1.bf16.msra.mxu0 %v654
        %822 = vmatprep.subr.bf16.mxu0 %v657
        %823 = vmatpush1.bf16.msra.mxu0 %v656
        %824 = vmatprep.subr.bf16.mxu0 %v659
        %825 = vmatpush1.bf16.msra.mxu0 %v658
        %826 = vmatprep.subr.bf16.mxu0 %v661
        %827 = vmatpush1.bf16.msra.mxu0 %v660
        %828 = vmatprep.subr.bf16.mxu0 0
        %829 = vmatpush1.bf16.msra.mxu0 0
        %830 = vmatprep.subr.bf16.mxu0 0
        %831 = vmatpush1.bf16.msra.mxu0 0
        %832 = vmatprep.mubr.bf16.mxu0 %v664
        %833 = vmatmul.mubr.bf16.gmra.mrb[0].mxu0 %v452
        %v834 = vpop.f32.mrb[0].mxu0
        %v835 = vadd.f32 %v722, %v834
        %v836 = vpop.f32.mrb[0].mxu0
        %v837 = vadd.f32 %v724, %v836
        %v838 = vpop.f32.mrb[0].mxu0
        %v839 = vadd.f32 %v726, %v838
        %v840 = vpop.f32.mrb[0].mxu0
        %v841 = vadd.f32 %v728, %v840
        %842 = vmatprep.mubr.bf16.mxu0 %v667
        %843 = vmatmul.mubr.bf16.gmra.mrb[0].mxu0 %v456
        %v844 = vpop.f32.mrb[0].mxu0
        %v845 = vadd.f32 %v732, %v844
        %v846 = vpop.f32.mrb[0].mxu0
        %v847 = vadd.f32 %v734, %v846
        %v848 = vpop.f32.mrb[0].mxu0
        %v849 = vadd.f32 %v736, %v848
        %v850 = vpop.f32.mrb[0].mxu0
        %v851 = vadd.f32 %v738, %v850
        %852 = vmatprep.mubr.bf16.mxu0 %v670
        %853 = vmatmul.mubr.bf16.gmra.mrb[0].mxu0 %v460
        %v854 = vpop.f32.mrb[0].mxu0
        %v855 = vadd.f32 %v742, %v854
        %v856 = vpop.f32.mrb[0].mxu0
        %v857 = vadd.f32 %v744, %v856
        %v858 = vpop.f32.mrb[0].mxu0
        %v859 = vadd.f32 %v746, %v858
        %v860 = vpop.f32.mrb[0].mxu0
        %v861 = vadd.f32 %v748, %v860
        %862 = vmatprep.mubr.bf16.mxu0 %v673
        %863 = vmatmul.mubr.bf16.gmra.mrb[0].mxu0 %v464
        %v864 = vpop.f32.mrb[0].mxu0
        %v865 = vadd.f32 %v752, %v864
        %v866 = vpop.f32.mrb[0].mxu0
        %v867 = vadd.f32 %v754, %v866
        %v868 = vpop.f32.mrb[0].mxu0
        %v869 = vadd.f32 %v756, %v868
        %v870 = vpop.f32.mrb[0].mxu0
        %v871 = vadd.f32 %v758, %v870
        %872 = vmatprep.mubr.bf16.mxu0 %v676
        %873 = vmatmul.mubr.bf16.gmra.mrb[0].mxu0 %v468
        %v874 = vpop.f32.mrb[0].mxu0
        %v875 = vadd.f32 %v762, %v874
        %v876 = vpop.f32.mrb[0].mxu0
        %v877 = vadd.f32 %v764, %v876
        %v878 = vpop.f32.mrb[0].mxu0
        %v879 = vadd.f32 %v766, %v878
        %v880 = vpop.f32.mrb[0].mxu0
        %v881 = vadd.f32 %v768, %v880
        %882 = vmatprep.mubr.bf16.mxu0 %v679
        %883 = vmatmul.mubr.bf16.gmra.mrb[0].mxu0 %v472
        %v884 = vpop.f32.mrb[0].mxu0
        %v885 = vadd.f32 %v772, %v884
        %v886 = vpop.f32.mrb[0].mxu0
        %v887 = vadd.f32 %v774, %v886
        %v888 = vpop.f32.mrb[0].mxu0
        %v889 = vadd.f32 %v776, %v888
        %v890 = vpop.f32.mrb[0].mxu0
        %v891 = vadd.f32 %v778, %v890
        %892 = vmatprep.mubr.bf16.mxu0 %v682
        %893 = vmatmul.mubr.bf16.gmra.mrb[0].mxu0 %v476
        %v894 = vpop.f32.mrb[0].mxu0
        %v895 = vadd.f32 %v782, %v894
        %v896 = vpop.f32.mrb[0].mxu0
        %v897 = vadd.f32 %v784, %v896
        %v898 = vpop.f32.mrb[0].mxu0
        %v899 = vadd.f32 %v786, %v898
        %v900 = vpop.f32.mrb[0].mxu0
        %v901 = vadd.f32 %v788, %v900
        %902 = vmatprep.mubr.bf16.mxu0 %v685
        %903 = vmatmul.mubr.bf16.gmra.mrb[0].mxu0 %v480
        %v904 = vpop.f32.mrb[0].mxu0
        %v905 = vadd.f32 %v792, %v904
        %v906 = vpop.f32.mrb[0].mxu0
        %v907 = vadd.f32 %v794, %v906
        %v908 = vpop.f32.mrb[0].mxu0
        %v909 = vadd.f32 %v796, %v908
        %v910 = vpop.f32.mrb[0].mxu0
        %v911 = vadd.f32 %v798, %v910
        %912 = vdwg.mxu0
        %vm913 = vcmask 556032
        %v914 = vsel %vm913, %v837, 0.0
        %v915 = vadd.f32 %v835, %v914
        %916 = vadd.xlane.f32.xlu0 %v915
        %v917 = vpop.xlane.xlu0 %916
        %v918 = vsel %vm913, %v841, 0.0
        %v919 = vadd.f32 %v839, %v918
        %920 = vadd.xlane.f32.xlu0 %v919
        %v921 = vpop.xlane.xlu0 %920
        %v922 = vsel %vm913, %v847, 0.0
        %v923 = vadd.f32 %v845, %v922
        %924 = vadd.xlane.f32.xlu0 %v923
        %v925 = vpop.xlane.xlu0 %924
        %v926 = vsel %vm913, %v851, 0.0
        %v927 = vadd.f32 %v849, %v926
        %928 = vadd.xlane.f32.xlu0 %v927
        %v929 = vpop.xlane.xlu0 %928
        %v930 = vsel %vm913, %v857, 0.0
        %v931 = vadd.f32 %v855, %v930
        %932 = vadd.xlane.f32.xlu0 %v931
        %v933 = vpop.xlane.xlu0 %932
        %v934 = vsel %vm913, %v861, 0.0
        %v935 = vadd.f32 %v859, %v934
        %936 = vadd.xlane.f32.xlu0 %v935
        %v937 = vpop.xlane.xlu0 %936
        %v938 = vsel %vm913, %v867, 0.0
        %v939 = vadd.f32 %v865, %v938
        %940 = vadd.xlane.f32.xlu0 %v939
        %v941 = vpop.xlane.xlu0 %940
        %v942 = vsel %vm913, %v871, 0.0
        %v943 = vadd.f32 %v869, %v942
        %944 = vadd.xlane.f32.xlu0 %v943
        %v945 = vpop.xlane.xlu0 %944
        %v946 = vsel %vm913, %v877, 0.0
        %v947 = vadd.f32 %v875, %v946
        %948 = vadd.xlane.f32.xlu0 %v947
        %v949 = vpop.xlane.xlu0 %948
        %v950 = vsel %vm913, %v881, 0.0
        %v951 = vadd.f32 %v879, %v950
        %952 = vadd.xlane.f32.xlu0 %v951
        %v953 = vpop.xlane.xlu0 %952
        %v954 = vsel %vm913, %v887, 0.0
        %v955 = vadd.f32 %v885, %v954
        %956 = vadd.xlane.f32.xlu0 %v955
        %v957 = vpop.xlane.xlu0 %956
        %v958 = vsel %vm913, %v891, 0.0
        %v959 = vadd.f32 %v889, %v958
        %960 = vadd.xlane.f32.xlu0 %v959
        %v961 = vpop.xlane.xlu0 %960
        %v962 = vsel %vm913, %v897, 0.0
        %v963 = vadd.f32 %v895, %v962
        %964 = vadd.xlane.f32.xlu0 %v963
        %v965 = vpop.xlane.xlu0 %964
        %v966 = vsel %vm913, %v901, 0.0
        %v967 = vadd.f32 %v899, %v966
        %968 = vadd.xlane.f32.xlu0 %v967
        %v969 = vpop.xlane.xlu0 %968
        %v970 = vsel %vm913, %v907, 0.0
        %v971 = vadd.f32 %v905, %v970
        %972 = vadd.xlane.f32.xlu0 %v971
        %v973 = vpop.xlane.xlu0 %972
        %v974 = vsel %vm913, %v911, 0.0
        %v975 = vadd.f32 %v909, %v974
        %976 = vadd.xlane.f32.xlu0 %v975
        %v977 = vpop.xlane.xlu0 %976
        %v978 = vmul.f32 %v835, %v835
        %v979 = vmul.f32 %v837, %v837
        %v980 = vmul.f32 %v839, %v839
        %v981 = vmul.f32 %v841, %v841
        %v982 = vmul.f32 %v845, %v845
        %v983 = vmul.f32 %v847, %v847
        %v984 = vmul.f32 %v849, %v849
        %v985 = vmul.f32 %v851, %v851
        %v986 = vmul.f32 %v855, %v855
        %v987 = vmul.f32 %v857, %v857
        %v988 = vmul.f32 %v859, %v859
        %v989 = vmul.f32 %v861, %v861
        %v990 = vmul.f32 %v865, %v865
        %v991 = vmul.f32 %v867, %v867
        %v992 = vmul.f32 %v869, %v869
        %v993 = vmul.f32 %v871, %v871
        %v994 = vmul.f32 %v875, %v875
        %v995 = vmul.f32 %v877, %v877
        %v996 = vmul.f32 %v879, %v879
        %v997 = vmul.f32 %v881, %v881
        %v998 = vmul.f32 %v885, %v885
        %v999 = vmul.f32 %v887, %v887
        %v1000 = vmul.f32 %v889, %v889
        %v1001 = vmul.f32 %v891, %v891
        %v1002 = vmul.f32 %v895, %v895
        %v1003 = vmul.f32 %v897, %v897
        %v1004 = vmul.f32 %v899, %v899
        %v1005 = vmul.f32 %v901, %v901
        %v1006 = vmul.f32 %v905, %v905
        %v1007 = vmul.f32 %v907, %v907
        %v1008 = vmul.f32 %v909, %v909
        %v1009 = vmul.f32 %v911, %v911
        %v1010 = vsel %vm913, %v979, 0.0
        %v1011 = vadd.f32 %v978, %v1010
        %1012 = vadd.xlane.f32.xlu0 %v1011
        %v1013 = vpop.xlane.xlu0 %1012
        %v1014 = vsel %vm913, %v981, 0.0
        %v1015 = vadd.f32 %v980, %v1014
        %1016 = vadd.xlane.f32.xlu0 %v1015
        %v1017 = vpop.xlane.xlu0 %1016
        %v1018 = vsel %vm913, %v983, 0.0
        %v1019 = vadd.f32 %v982, %v1018
        %1020 = vadd.xlane.f32.xlu0 %v1019
        %v1021 = vpop.xlane.xlu0 %1020
        %v1022 = vsel %vm913, %v985, 0.0
        %v1023 = vadd.f32 %v984, %v1022
        %1024 = vadd.xlane.f32.xlu0 %v1023
        %v1025 = vpop.xlane.xlu0 %1024
        %v1026 = vsel %vm913, %v987, 0.0
        %v1027 = vadd.f32 %v986, %v1026
        %1028 = vadd.xlane.f32.xlu0 %v1027
        %v1029 = vpop.xlane.xlu0 %1028
        %v1030 = vsel %vm913, %v989, 0.0
        %v1031 = vadd.f32 %v988, %v1030
        %1032 = vadd.xlane.f32.xlu0 %v1031
        %v1033 = vpop.xlane.xlu0 %1032
        %v1034 = vsel %vm913, %v991, 0.0
        %v1035 = vadd.f32 %v990, %v1034
        %1036 = vadd.xlane.f32.xlu0 %v1035
        %v1037 = vpop.xlane.xlu0 %1036
        %v1038 = vsel %vm913, %v993, 0.0
        %v1039 = vadd.f32 %v992, %v1038
        %1040 = vadd.xlane.f32.xlu0 %v1039
        %v1041 = vpop.xlane.xlu0 %1040
        %v1042 = vsel %vm913, %v995, 0.0
        %v1043 = vadd.f32 %v994, %v1042
        %1044 = vadd.xlane.f32.xlu0 %v1043
        %v1045 = vpop.xlane.xlu0 %1044
        %v1046 = vsel %vm913, %v997, 0.0
        %v1047 = vadd.f32 %v996, %v1046
        %1048 = vadd.xlane.f32.xlu0 %v1047
        %v1049 = vpop.xlane.xlu0 %1048
        %v1050 = vsel %vm913, %v999, 0.0
        %v1051 = vadd.f32 %v998, %v1050
        %1052 = vadd.xlane.f32.xlu0 %v1051
        %v1053 = vpop.xlane.xlu0 %1052
        %v1054 = vsel %vm913, %v1001, 0.0
        %v1055 = vadd.f32 %v1000, %v1054
        %1056 = vadd.xlane.f32.xlu0 %v1055
        %v1057 = vpop.xlane.xlu0 %1056
        %v1058 = vsel %vm913, %v1003, 0.0
        %v1059 = vadd.f32 %v1002, %v1058
        %1060 = vadd.xlane.f32.xlu0 %v1059
        %v1061 = vpop.xlane.xlu0 %1060
        %v1062 = vsel %vm913, %v1005, 0.0
        %v1063 = vadd.f32 %v1004, %v1062
        %1064 = vadd.xlane.f32.xlu0 %v1063
        %v1065 = vpop.xlane.xlu0 %1064
        %v1066 = vsel %vm913, %v1007, 0.0
        %v1067 = vadd.f32 %v1006, %v1066
        %1068 = vadd.xlane.f32.xlu0 %v1067
        %v1069 = vpop.xlane.xlu0 %1068
        %v1070 = vsel %vm913, %v1009, 0.0
        %v1071 = vadd.f32 %v1008, %v1070
        %1072 = vadd.xlane.f32.xlu0 %v1071
        %v1073 = vpop.xlane.xlu0 %1072
        %v1074 = vmul.f32 %v917, 0.0051020407
        %v1075 = vmul.f32 %v921, 0.0051020407
        %v1076 = vmul.f32 %v925, 0.0051020407
        %v1077 = vmul.f32 %v929, 0.0051020407
        %v1078 = vmul.f32 %v933, 0.0051020407
        %v1079 = vmul.f32 %v937, 0.0051020407
        %v1080 = vmul.f32 %v941, 0.0051020407
        %v1081 = vmul.f32 %v945, 0.0051020407
        %v1082 = vmul.f32 %v949, 0.0051020407
        %v1083 = vmul.f32 %v953, 0.0051020407
        %v1084 = vmul.f32 %v957, 0.0051020407
        %v1085 = vmul.f32 %v961, 0.0051020407
        %v1086 = vmul.f32 %v965, 0.0051020407
        %v1087 = vmul.f32 %v969, 0.0051020407
        %v1088 = vmul.f32 %v973, 0.0051020407
        %v1089 = vmul.f32 %v977, 0.0051020407
        %v1090 = vmul.f32 %v1013, 0.0051020407
        %v1091 = vmul.f32 %v1017, 0.0051020407
        %v1092 = vmul.f32 %v1021, 0.0051020407
        %v1093 = vmul.f32 %v1025, 0.0051020407
        %v1094 = vmul.f32 %v1029, 0.0051020407
        %v1095 = vmul.f32 %v1033, 0.0051020407
        %v1096 = vmul.f32 %v1037, 0.0051020407
        %v1097 = vmul.f32 %v1041, 0.0051020407
        %v1098 = vmul.f32 %v1045, 0.0051020407
        %v1099 = vmul.f32 %v1049, 0.0051020407
        %v1100 = vmul.f32 %v1053, 0.0051020407
        %v1101 = vmul.f32 %v1057, 0.0051020407
        %v1102 = vmul.f32 %v1061, 0.0051020407
        %v1103 = vmul.f32 %v1065, 0.0051020407
        %v1104 = vmul.f32 %v1069, 0.0051020407
        %v1105 = vmul.f32 %v1073, 0.0051020407
        %v1106 = vmul.f32 %v1074, %v1074
        %v1107 = vmul.f32 %v1075, %v1075
        %v1108 = vmul.f32 %v1076, %v1076
        %v1109 = vmul.f32 %v1077, %v1077
        %v1110 = vmul.f32 %v1078, %v1078
        %v1111 = vmul.f32 %v1079, %v1079
        %v1112 = vmul.f32 %v1080, %v1080
        %v1113 = vmul.f32 %v1081, %v1081
        %v1114 = vmul.f32 %v1082, %v1082
        %v1115 = vmul.f32 %v1083, %v1083
        %v1116 = vmul.f32 %v1084, %v1084
        %v1117 = vmul.f32 %v1085, %v1085
        %v1118 = vmul.f32 %v1086, %v1086
        %v1119 = vmul.f32 %v1087, %v1087
        %v1120 = vmul.f32 %v1088, %v1088
        %v1121 = vmul.f32 %v1089, %v1089
        %v1122 = vsub.f32 %v1090, %v1106
        %v1123 = vsub.f32 %v1091, %v1107
        %v1124 = vsub.f32 %v1092, %v1108
        %v1125 = vsub.f32 %v1093, %v1109
        %v1126 = vsub.f32 %v1094, %v1110
        %v1127 = vsub.f32 %v1095, %v1111
        %v1128 = vsub.f32 %v1096, %v1112
        %v1129 = vsub.f32 %v1097, %v1113
        %v1130 = vsub.f32 %v1098, %v1114
        %v1131 = vsub.f32 %v1099, %v1115
        %v1132 = vsub.f32 %v1100, %v1116
        %v1133 = vsub.f32 %v1101, %v1117
        %v1134 = vsub.f32 %v1102, %v1118
        %v1135 = vsub.f32 %v1103, %v1119
        %v1136 = vsub.f32 %v1104, %v1120
        %v1137 = vsub.f32 %v1105, %v1121
        %v1138 = vmax.f32 %v1122, 0.0
        %v1139 = vmax.f32 %v1123, 0.0
        %v1140 = vmax.f32 %v1124, 0.0
        %v1141 = vmax.f32 %v1125, 0.0
        %v1142 = vmax.f32 %v1126, 0.0
        %v1143 = vmax.f32 %v1127, 0.0
        %v1144 = vmax.f32 %v1128, 0.0
        %v1145 = vmax.f32 %v1129, 0.0
        %v1146 = vmax.f32 %v1130, 0.0
        %v1147 = vmax.f32 %v1131, 0.0
        %v1148 = vmax.f32 %v1132, 0.0
        %v1149 = vmax.f32 %v1133, 0.0
        %v1150 = vmax.f32 %v1134, 0.0
        %v1151 = vmax.f32 %v1135, 0.0
        %v1152 = vmax.f32 %v1136, 0.0
        %v1153 = vmax.f32 %v1137, 0.0
        %v1154 = vadd.f32 %v1138, 1e-05
        %v1155 = vadd.f32 %v1139, 1e-05
        %v1156 = vadd.f32 %v1140, 1e-05
        %v1157 = vadd.f32 %v1141, 1e-05
        %v1158 = vadd.f32 %v1142, 1e-05
        %v1159 = vadd.f32 %v1143, 1e-05
        %v1160 = vadd.f32 %v1144, 1e-05
        %v1161 = vadd.f32 %v1145, 1e-05
        %v1162 = vadd.f32 %v1146, 1e-05
        %v1163 = vadd.f32 %v1147, 1e-05
        %v1164 = vadd.f32 %v1148, 1e-05
        %v1165 = vadd.f32 %v1149, 1e-05
        %v1166 = vadd.f32 %v1150, 1e-05
        %v1167 = vadd.f32 %v1151, 1e-05
        %v1168 = vadd.f32 %v1152, 1e-05
        %v1169 = vadd.f32 %v1153, 1e-05
        %v1170 = vrsqrt.pop %v1154
        %v1171 = vrsqrt.pop %v1155
        %v1172 = vrsqrt.pop %v1156
        %v1173 = vrsqrt.pop %v1157
        %v1174 = vrsqrt.pop %v1158
        %v1175 = vrsqrt.pop %v1159
        %v1176 = vrsqrt.pop %v1160
        %v1177 = vrsqrt.pop %v1161
        %v1178 = vrsqrt.pop %v1162
        %v1179 = vrsqrt.pop %v1163
        %v1180 = vrsqrt.pop %v1164
        %v1181 = vrsqrt.pop %v1165
        %v1182 = vrsqrt.pop %v1166
        %v1183 = vrsqrt.pop %v1167
        %v1184 = vrsqrt.pop %v1168
        %v1185 = vrsqrt.pop %v1169
        %v1186 = vld [vmem:[%s3] sm:$0xff]
        %v1187 = vld [vmem:[%s3 + $0x8] sm:$0xff]
        %v1188 = vld [vmem:[%s3 + $0x10] sm:$0xff]
        %v1189 = vld [vmem:[%s3 + $0x18] sm:$0xff]
        %v1190 = vld [vmem:[%s3 + $0x20] sm:$0xff]
        %v1191 = vld [vmem:[%s3 + $0x28] sm:$0xff]
        %v1192 = vld [vmem:[%s3 + $0x30] sm:$0xff]
        %v1193 = vld [vmem:[%s3 + $0x38] sm:$0xff]
        %v1194 = vld [vmem:[%s3 + $0x40] sm:$0xff]
        %v1195 = vld [vmem:[%s3 + $0x48] sm:$0xff]
        %v1196 = vld [vmem:[%s3 + $0x50] sm:$0xff]
        %v1197 = vld [vmem:[%s3 + $0x58] sm:$0xff]
        %v1198 = vld [vmem:[%s3 + $0x60] sm:$0xff]
        %v1199 = vld [vmem:[%s3 + $0x68] sm:$0xff]
        %v1200 = vld [vmem:[%s3 + $0x70] sm:$0xff]
        %v1201 = vld [vmem:[%s3 + $0x78] sm:$0xff]
        %v1202 = vmul.f32 %v1170, %v1186
        %v1203 = vmul.f32 %v1171, %v1187
        %v1204 = vmul.f32 %v1172, %v1188
        %v1205 = vmul.f32 %v1173, %v1189
        %v1206 = vmul.f32 %v1174, %v1190
        %v1207 = vmul.f32 %v1175, %v1191
        %v1208 = vmul.f32 %v1176, %v1192
        %v1209 = vmul.f32 %v1177, %v1193
        %v1210 = vmul.f32 %v1178, %v1194
        %v1211 = vmul.f32 %v1179, %v1195
        %v1212 = vmul.f32 %v1180, %v1196
        %v1213 = vmul.f32 %v1181, %v1197
        %v1214 = vmul.f32 %v1182, %v1198
        %v1215 = vmul.f32 %v1183, %v1199
        %v1216 = vmul.f32 %v1184, %v1200
        %v1217 = vmul.f32 %v1185, %v1201
        %v1218 = vld [vmem:[%s4] sm:$0xff]
        %v1219 = vld [vmem:[%s4 + $0x8] sm:$0xff]
        %v1220 = vld [vmem:[%s4 + $0x10] sm:$0xff]
        %v1221 = vld [vmem:[%s4 + $0x18] sm:$0xff]
        %v1222 = vld [vmem:[%s4 + $0x20] sm:$0xff]
        %v1223 = vld [vmem:[%s4 + $0x28] sm:$0xff]
        %v1224 = vld [vmem:[%s4 + $0x30] sm:$0xff]
        %v1225 = vld [vmem:[%s4 + $0x38] sm:$0xff]
        %v1226 = vld [vmem:[%s4 + $0x40] sm:$0xff]
        %v1227 = vld [vmem:[%s4 + $0x48] sm:$0xff]
        %v1228 = vld [vmem:[%s4 + $0x50] sm:$0xff]
        %v1229 = vld [vmem:[%s4 + $0x58] sm:$0xff]
        %v1230 = vld [vmem:[%s4 + $0x60] sm:$0xff]
        %v1231 = vld [vmem:[%s4 + $0x68] sm:$0xff]
        %v1232 = vld [vmem:[%s4 + $0x70] sm:$0xff]
        %v1233 = vld [vmem:[%s4 + $0x78] sm:$0xff]
        %v1234 = vmul.f32 %v1074, %v1202
        %v1235 = vmul.f32 %v1075, %v1203
        %v1236 = vmul.f32 %v1076, %v1204
        %v1237 = vmul.f32 %v1077, %v1205
        %v1238 = vmul.f32 %v1078, %v1206
        %v1239 = vmul.f32 %v1079, %v1207
        %v1240 = vmul.f32 %v1080, %v1208
        %v1241 = vmul.f32 %v1081, %v1209
        %v1242 = vmul.f32 %v1082, %v1210
        %v1243 = vmul.f32 %v1083, %v1211
        %v1244 = vmul.f32 %v1084, %v1212
        %v1245 = vmul.f32 %v1085, %v1213
        %v1246 = vmul.f32 %v1086, %v1214
        %v1247 = vmul.f32 %v1087, %v1215
        %v1248 = vmul.f32 %v1088, %v1216
        %v1249 = vmul.f32 %v1089, %v1217
        %v1250 = vsub.f32 %v1218, %v1234
        %v1251 = vsub.f32 %v1219, %v1235
        %v1252 = vsub.f32 %v1220, %v1236
        %v1253 = vsub.f32 %v1221, %v1237
        %v1254 = vsub.f32 %v1222, %v1238
        %v1255 = vsub.f32 %v1223, %v1239
        %v1256 = vsub.f32 %v1224, %v1240
        %v1257 = vsub.f32 %v1225, %v1241
        %v1258 = vsub.f32 %v1226, %v1242
        %v1259 = vsub.f32 %v1227, %v1243
        %v1260 = vsub.f32 %v1228, %v1244
        %v1261 = vsub.f32 %v1229, %v1245
        %v1262 = vsub.f32 %v1230, %v1246
        %v1263 = vsub.f32 %v1231, %v1247
        %v1264 = vsub.f32 %v1232, %v1248
        %v1265 = vsub.f32 %v1233, %v1249
        %1267 = vset.pattern.permute.xlu0 0
        %1268 = vperm.xlu0 %1267, %v1202
        %v1269 = vpop.permute.xlu0 %1268
        %1272 = vset.pattern.permute.xlu0 0
        %1273 = vperm.xlu0 %1272, %v1203
        %v1274 = vpop.permute.xlu0 %1273
        %1277 = vset.pattern.permute.xlu0 0
        %1278 = vperm.xlu0 %1277, %v1204
        %v1279 = vpop.permute.xlu0 %1278
        %1282 = vset.pattern.permute.xlu0 0
        %1283 = vperm.xlu0 %1282, %v1205
        %v1284 = vpop.permute.xlu0 %1283
        %1287 = vset.pattern.permute.xlu0 0
        %1288 = vperm.xlu0 %1287, %v1206
        %v1289 = vpop.permute.xlu0 %1288
        %1292 = vset.pattern.permute.xlu0 0
        %1293 = vperm.xlu0 %1292, %v1207
        %v1294 = vpop.permute.xlu0 %1293
        %1297 = vset.pattern.permute.xlu0 0
        %1298 = vperm.xlu0 %1297, %v1208
        %v1299 = vpop.permute.xlu0 %1298
        %1302 = vset.pattern.permute.xlu0 0
        %1303 = vperm.xlu0 %1302, %v1209
        %v1304 = vpop.permute.xlu0 %1303
        %1307 = vset.pattern.permute.xlu0 0
        %1308 = vperm.xlu0 %1307, %v1210
        %v1309 = vpop.permute.xlu0 %1308
        %1312 = vset.pattern.permute.xlu0 0
        %1313 = vperm.xlu0 %1312, %v1211
        %v1314 = vpop.permute.xlu0 %1313
        %1317 = vset.pattern.permute.xlu0 0
        %1318 = vperm.xlu0 %1317, %v1212
        %v1319 = vpop.permute.xlu0 %1318
        %1322 = vset.pattern.permute.xlu0 0
        %1323 = vperm.xlu0 %1322, %v1213
        %v1324 = vpop.permute.xlu0 %1323
        %1327 = vset.pattern.permute.xlu0 0
        %1328 = vperm.xlu0 %1327, %v1214
        %v1329 = vpop.permute.xlu0 %1328
        %1332 = vset.pattern.permute.xlu0 0
        %1333 = vperm.xlu0 %1332, %v1215
        %v1334 = vpop.permute.xlu0 %1333
        %1337 = vset.pattern.permute.xlu0 0
        %1338 = vperm.xlu0 %1337, %v1216
        %v1339 = vpop.permute.xlu0 %1338
        %1342 = vset.pattern.permute.xlu0 0
        %1343 = vperm.xlu0 %1342, %v1217
        %v1344 = vpop.permute.xlu0 %1343
        %v1346 = vmul.f32 %v835, %v1269
        %v1347 = vmul.f32 %v837, %v1269
        %v1348 = vmul.f32 %v839, %v1274
        %v1349 = vmul.f32 %v841, %v1274
        %v1350 = vmul.f32 %v845, %v1279
        %v1351 = vmul.f32 %v847, %v1279
        %v1352 = vmul.f32 %v849, %v1284
        %v1353 = vmul.f32 %v851, %v1284
        %v1354 = vmul.f32 %v855, %v1289
        %v1355 = vmul.f32 %v857, %v1289
        %v1356 = vmul.f32 %v859, %v1294
        %v1357 = vmul.f32 %v861, %v1294
        %v1358 = vmul.f32 %v865, %v1299
        %v1359 = vmul.f32 %v867, %v1299
        %v1360 = vmul.f32 %v869, %v1304
        %v1361 = vmul.f32 %v871, %v1304
        %v1362 = vmul.f32 %v875, %v1309
        %v1363 = vmul.f32 %v877, %v1309
        %v1364 = vmul.f32 %v879, %v1314
        %v1365 = vmul.f32 %v881, %v1314
        %v1366 = vmul.f32 %v885, %v1319
        %v1367 = vmul.f32 %v887, %v1319
        %v1368 = vmul.f32 %v889, %v1324
        %v1369 = vmul.f32 %v891, %v1324
        %v1370 = vmul.f32 %v895, %v1329
        %v1371 = vmul.f32 %v897, %v1329
        %v1372 = vmul.f32 %v899, %v1334
        %v1373 = vmul.f32 %v901, %v1334
        %v1374 = vmul.f32 %v905, %v1339
        %v1375 = vmul.f32 %v907, %v1339
        %v1376 = vmul.f32 %v909, %v1344
        %v1377 = vmul.f32 %v911, %v1344
        %1379 = vset.pattern.permute.xlu0 0
        %1380 = vperm.xlu0 %1379, %v1250
        %v1381 = vpop.permute.xlu0 %1380
        %1384 = vset.pattern.permute.xlu0 0
        %1385 = vperm.xlu0 %1384, %v1251
        %v1386 = vpop.permute.xlu0 %1385
        %1389 = vset.pattern.permute.xlu0 0
        %1390 = vperm.xlu0 %1389, %v1252
        %v1391 = vpop.permute.xlu0 %1390
        %1394 = vset.pattern.permute.xlu0 0
        %1395 = vperm.xlu0 %1394, %v1253
        %v1396 = vpop.permute.xlu0 %1395
        %1399 = vset.pattern.permute.xlu0 0
        %1400 = vperm.xlu0 %1399, %v1254
        %v1401 = vpop.permute.xlu0 %1400
        %1404 = vset.pattern.permute.xlu0 0
        %1405 = vperm.xlu0 %1404, %v1255
        %v1406 = vpop.permute.xlu0 %1405
        %1409 = vset.pattern.permute.xlu0 0
        %1410 = vperm.xlu0 %1409, %v1256
        %v1411 = vpop.permute.xlu0 %1410
        %1414 = vset.pattern.permute.xlu0 0
        %1415 = vperm.xlu0 %1414, %v1257
        %v1416 = vpop.permute.xlu0 %1415
        %1419 = vset.pattern.permute.xlu0 0
        %1420 = vperm.xlu0 %1419, %v1258
        %v1421 = vpop.permute.xlu0 %1420
        %1424 = vset.pattern.permute.xlu0 0
        %1425 = vperm.xlu0 %1424, %v1259
        %v1426 = vpop.permute.xlu0 %1425
        %1429 = vset.pattern.permute.xlu0 0
        %1430 = vperm.xlu0 %1429, %v1260
        %v1431 = vpop.permute.xlu0 %1430
        %1434 = vset.pattern.permute.xlu0 0
        %1435 = vperm.xlu0 %1434, %v1261
        %v1436 = vpop.permute.xlu0 %1435
        %1439 = vset.pattern.permute.xlu0 0
        %1440 = vperm.xlu0 %1439, %v1262
        %v1441 = vpop.permute.xlu0 %1440
        %1444 = vset.pattern.permute.xlu0 0
        %1445 = vperm.xlu0 %1444, %v1263
        %v1446 = vpop.permute.xlu0 %1445
        %1449 = vset.pattern.permute.xlu0 0
        %1450 = vperm.xlu0 %1449, %v1264
        %v1451 = vpop.permute.xlu0 %1450
        %1454 = vset.pattern.permute.xlu0 0
        %1455 = vperm.xlu0 %1454, %v1265
        %v1456 = vpop.permute.xlu0 %1455
        %v1458 = vadd.f32 %v1346, %v1381
        %v1459 = vadd.f32 %v1347, %v1381
        %v1460 = vadd.f32 %v1348, %v1386
        %v1461 = vadd.f32 %v1349, %v1386
        %v1462 = vadd.f32 %v1350, %v1391
        %v1463 = vadd.f32 %v1351, %v1391
        %v1464 = vadd.f32 %v1352, %v1396
        %v1465 = vadd.f32 %v1353, %v1396
        %v1466 = vadd.f32 %v1354, %v1401
        %v1467 = vadd.f32 %v1355, %v1401
        %v1468 = vadd.f32 %v1356, %v1406
        %v1469 = vadd.f32 %v1357, %v1406
        %v1470 = vadd.f32 %v1358, %v1411
        %v1471 = vadd.f32 %v1359, %v1411
        %v1472 = vadd.f32 %v1360, %v1416
        %v1473 = vadd.f32 %v1361, %v1416
        %v1474 = vadd.f32 %v1362, %v1421
        %v1475 = vadd.f32 %v1363, %v1421
        %v1476 = vadd.f32 %v1364, %v1426
        %v1477 = vadd.f32 %v1365, %v1426
        %v1478 = vadd.f32 %v1366, %v1431
        %v1479 = vadd.f32 %v1367, %v1431
        %v1480 = vadd.f32 %v1368, %v1436
        %v1481 = vadd.f32 %v1369, %v1436
        %v1482 = vadd.f32 %v1370, %v1441
        %v1483 = vadd.f32 %v1371, %v1441
        %v1484 = vadd.f32 %v1372, %v1446
        %v1485 = vadd.f32 %v1373, %v1446
        %v1486 = vadd.f32 %v1374, %v1451
        %v1487 = vadd.f32 %v1375, %v1451
        %v1488 = vadd.f32 %v1376, %v1456
        %v1489 = vadd.f32 %v1377, %v1456
        %v1490 = vpack.c.bf16 %v1460, %v1458
        %v1491 = vpack.c.bf16 %v1461, %v1459
        %v1492 = vpack.c.bf16 %v1464, %v1462
        %v1493 = vpack.c.bf16 %v1465, %v1463
        %v1494 = vpack.c.bf16 %v1468, %v1466
        %v1495 = vpack.c.bf16 %v1469, %v1467
        %v1496 = vpack.c.bf16 %v1472, %v1470
        %v1497 = vpack.c.bf16 %v1473, %v1471
        %v1498 = vpack.c.bf16 %v1476, %v1474
        %v1499 = vpack.c.bf16 %v1477, %v1475
        %v1500 = vpack.c.bf16 %v1480, %v1478
        %v1501 = vpack.c.bf16 %v1481, %v1479
        %v1502 = vpack.c.bf16 %v1484, %v1482
        %v1503 = vpack.c.bf16 %v1485, %v1483
        %v1504 = vpack.c.bf16 %v1488, %v1486
        %v1505 = vpack.c.bf16 %v1489, %v1487
        %1506 = vst [vmem:[#allocation2] sm:$0xff] %v1490
        %1507 = vst.msk [vmem:[#allocation2 + $0x8] sm:$0xff] %vm913, %v1491
        %1508 = vst [vmem:[#allocation2 + $0x10] sm:$0xff] %v1492
        %1509 = vst.msk [vmem:[#allocation2 + $0x18] sm:$0xff] %vm913, %v1493
        %1510 = vst [vmem:[#allocation2 + $0x20] sm:$0xff] %v1494
        %1511 = vst.msk [vmem:[#allocation2 + $0x28] sm:$0xff] %vm913, %v1495
        %1512 = vst [vmem:[#allocation2 + $0x30] sm:$0xff] %v1496
        %1513 = vst.msk [vmem:[#allocation2 + $0x38] sm:$0xff] %vm913, %v1497
        %1514 = vst [vmem:[#allocation2 + $0x40] sm:$0xff] %v1498
        %1515 = vst.msk [vmem:[#allocation2 + $0x48] sm:$0xff] %vm913, %v1499
        %1516 = vst [vmem:[#allocation2 + $0x50] sm:$0xff] %v1500
        %1517 = vst.msk [vmem:[#allocation2 + $0x58] sm:$0xff] %vm913, %v1501
        %1518 = vst [vmem:[#allocation2 + $0x60] sm:$0xff] %v1502
        %1519 = vst.msk [vmem:[#allocation2 + $0x68] sm:$0xff] %vm913, %v1503
        %1520 = vst [vmem:[#allocation2 + $0x70] sm:$0xff] %v1504
        %1521 = vst.msk [vmem:[#allocation2 + $0x78] sm:$0xff] %vm913, %v1505
      $region48: #{tpu_custom_call.1} parent=43 // pred_fallthru
        _
      %v1522 = vld [vmem:[%s248] sm:$0xf]
      %v1523 = vld [vmem:[%s248 + $0x4] sm:$0xf]
      %v1524 = vld [vmem:[%s248 + $0x8] sm:$0xf]
      %v1525 = vld [vmem:[%s248 + $0xc] sm:$0xf]
      %v1526 = vld [vmem:[%s248 + $0x10] sm:$0xf]
      %v1527 = vld [vmem:[%s248 + $0x14] sm:$0xf]
      %v1528 = vld [vmem:[%s248 + $0x18] sm:$0xf]
      %v1529 = vld [vmem:[%s248 + $0x1c] sm:$0xf]
      %v1530 = vld [vmem:[%s248 + $0x20] sm:$0xf]
      %v1531 = vld [vmem:[%s248 + $0x24] sm:$0xf]
      %v1532 = vld [vmem:[%s248 + $0x28] sm:$0xf]
      %v1533 = vld [vmem:[%s248 + $0x2c] sm:$0xf]
      %v1534 = vld [vmem:[%s248 + $0x30] sm:$0xf]
      %v1535 = vld [vmem:[%s248 + $0x34] sm:$0xf]
      %v1536 = vld [vmem:[%s248 + $0x38] sm:$0xf]
      %v1537 = vld [vmem:[%s248 + $0x3c] sm:$0xf]
      %v1538 = vld [vmem:[%s248 + $0x40] sm:$0xf]
      %v1539 = vld [vmem:[%s248 + $0x44] sm:$0xf]
      %v1540 = vld [vmem:[%s248 + $0x48] sm:$0xf]
      %v1541 = vld [vmem:[%s248 + $0x4c] sm:$0xf]
      %v1542 = vld [vmem:[%s248 + $0x50] sm:$0xf]
      %v1543 = vld [vmem:[#allocation2] sm:$0xff]
      %v1544 = vld [vmem:[#allocation2 + $0x8] sm:$0xff]
      %v1545 = vld [vmem:[#allocation2 + $0x10] sm:$0xff]
      %v1546 = vld [vmem:[#allocation2 + $0x18] sm:$0xff]
      %v1547 = vld [vmem:[#allocation2 + $0x20] sm:$0xff]
      %v1548 = vld [vmem:[#allocation2 + $0x28] sm:$0xff]
      %v1549 = vld [vmem:[#allocation2 + $0x30] sm:$0xff]
      %v1550 = vld [vmem:[#allocation2 + $0x38] sm:$0xff]
      %v1551 = vld [vmem:[#allocation2 + $0x40] sm:$0xff]
      %v1552 = vld [vmem:[#allocation2 + $0x48] sm:$0xff]
      %v1553 = vld [vmem:[#allocation2 + $0x50] sm:$0xff]
      %v1554 = vld [vmem:[#allocation2 + $0x58] sm:$0xff]
      %v1555 = vld [vmem:[#allocation2 + $0x60] sm:$0xff]
      %v1556 = vld [vmem:[#allocation2 + $0x68] sm:$0xff]
      %v1557 = vld [vmem:[#allocation2 + $0x70] sm:$0xff]
      %v1558 = vld [vmem:[#allocation2 + $0x78] sm:$0xff]
      %v1580 = vunpack.c.l.b16 %v1522
      %v1581 = vunpack.c.l.b16 %v1523
      %v1582 = vunpack.c.l.b16 %v1524
      %v1583 = vunpack.c.l.b16 %v1525
      %v1584 = vunpack.c.l.b16 %v1526
      %v1585 = vunpack.c.l.b16 %v1527
      %v1586 = vunpack.c.l.b16 %v1528
      %v1587 = vunpack.c.l.b16 %v1529
      %v1588 = vunpack.c.l.b16 %v1530
      %v1589 = vunpack.c.l.b16 %v1531
      %v1590 = vunpack.c.l.b16 %v1532
      %v1591 = vunpack.c.l.b16 %v1533
      %v1592 = vunpack.c.l.b16 %v1534
      %v1593 = vunpack.c.l.b16 %v1535
      %v1594 = vunpack.c.l.b16 %v1536
      %v1595 = vunpack.c.l.b16 %v1537
      %v1596 = vunpack.c.l.b16 %v1538
      %v1597 = vunpack.c.l.b16 %v1539
      %v1598 = vunpack.c.l.b16 %v1540
      %v1599 = vunpack.c.l.b16 %v1541
      %v1600 = vunpack.c.l.b16 %v1542
      %v1601 = vpack.c.b16 %v1581, %v1580
      %v1602 = vpack.c.b16 %v1583, %v1582
      %v1603 = vpack.c.b16 %v1585, %v1584
      %v1604 = vpack.c.b16 %v1587, %v1586
      %v1605 = vpack.c.b16 %v1589, %v1588
      %v1606 = vpack.c.b16 %v1591, %v1590
      %v1607 = vpack.c.b16 %v1593, %v1592
      %v1608 = vpack.c.b16 %v1595, %v1594
      %v1609 = vpack.c.b16 %v1597, %v1596
      %v1610 = vpack.c.b16 %v1599, %v1598
      %v1611 = vpack.c.b16 %v1600, %v1600
      %1623 = vmatprep.subr.bf16.mxu0 %v1544
      %1624 = vmatpush1.bf16.msra.mxu0 %v1543
      %1625 = vmatprep.subr.bf16.mxu0 %v1546
      %1626 = vmatpush1.bf16.msra.mxu0 %v1545
      %1627 = vmatprep.subr.bf16.mxu0 %v1548
      %1628 = vmatpush1.bf16.msra.mxu0 %v1547
      %1629 = vmatprep.subr.bf16.mxu0 %v1550
      %1630 = vmatpush1.bf16.msra.mxu0 %v1549
      %1631 = vmatprep.subr.bf16.mxu0 %v1552
      %1632 = vmatpush1.bf16.msra.mxu0 %v1551
      %1633 = vmatprep.subr.bf16.mxu0 %v1554
      %1634 = vmatpush1.bf16.msra.mxu0 %v1553
      %1635 = vmatprep.subr.bf16.mxu0 %v1556
      %1636 = vmatpush1.bf16.msra.mxu0 %v1555
      %1637 = vmatprep.subr.bf16.mxu0 %v1558
      %1638 = vmatpush1.bf16.msra.mxu0 %v1557
      %1639 = vmatprep.subr.bf16.mxu0 0
      %1640 = vmatpush1.bf16.msra.mxu0 0
      %1641 = vmatprep.subr.bf16.mxu0 0
      %1642 = vmatpush1.bf16.msra.mxu0 0
      %1643 = vmatprep.subr.bf16.mxu0 0
      %1644 = vmatpush1.bf16.msra.mxu0 0
      %1645 = vmatprep.subr.bf16.mxu0 0
      %1646 = vmatpush1.bf16.msra.mxu0 0
      %1647 = vmatprep.subr.bf16.mxu0 0
      %1648 = vmatpush1.bf16.msra.mxu0 0
      %1649 = vmatprep.subr.bf16.mxu0 0
      %1650 = vmatpush1.bf16.msra.mxu0 0
      %1651 = vmatprep.subr.bf16.mxu0 0
      %1652 = vmatpush1.bf16.msra.mxu0 0
      %1653 = vmatprep.subr.bf16.mxu0 0
      %1654 = vmatpush1.bf16.msra.mxu0 0
      %1655 = vmatprep.mubr.bf16.mxu0 0
      %1656 = vmatmul.mubr.bf16.gmra.mrb[0].mxu0 %v1601
      %v1657 = vpop.f32.mrb[0].mxu0
      %v1658 = vadd.f32 0.0, %v1657
      %v1659 = vpop.f32.mrb[0].mxu0
      %v1660 = vadd.f32 0.0, %v1659
      %v1661 = vpop.f32.mrb[0].mxu0
      %v1662 = vadd.f32 0.0, %v1661
      %v1663 = vpop.f32.mrb[0].mxu0
      %v1664 = vadd.f32 0.0, %v1663
      %1665 = vmatprep.mubr.bf16.mxu0 0
      %1666 = vmatmul.mubr.bf16.gmra.mrb[0].mxu0 %v1602
      %v1667 = vpop.f32.mrb[0].mxu0
      %v1668 = vadd.f32 0.0, %v1667
      %v1669 = vpop.f32.mrb[0].mxu0
      %v1670 = vadd.f32 0.0, %v1669
      %v1671 = vpop.f32.mrb[0].mxu0
      %v1672 = vadd.f32 0.0, %v1671
      %v1673 = vpop.f32.mrb[0].mxu0
      %v1674 = vadd.f32 0.0, %v1673
      %1675 = vmatprep.mubr.bf16.mxu0 0
      %1676 = vmatmul.mubr.bf16.gmra.mrb[0].mxu0 %v1603
      %v1677 = vpop.f32.mrb[0].mxu0
      %v1678 = vadd.f32 0.0, %v1677
      %v1679 = vpop.f32.mrb[0].mxu0
      %v1680 = vadd.f32 0.0, %v1679
      %v1681 = vpop.f32.mrb[0].mxu0
      %v1682 = vadd.f32 0.0, %v1681
      %v1683 = vpop.f32.mrb[0].mxu0
      %v1684 = vadd.f32 0.0, %v1683
      %1685 = vmatprep.mubr.bf16.mxu0 0
      %1686 = vmatmul.mubr.bf16.gmra.mrb[0].mxu0 %v1604
      %v1687 = vpop.f32.mrb[0].mxu0
      %v1688 = vadd.f32 0.0, %v1687
      %v1689 = vpop.f32.mrb[0].mxu0
      %v1690 = vadd.f32 0.0, %v1689
      %v1691 = vpop.f32.mrb[0].mxu0
      %v1692 = vadd.f32 0.0, %v1691
      %v1693 = vpop.f32.mrb[0].mxu0
      %v1694 = vadd.f32 0.0, %v1693
      %1695 = vmatprep.mubr.bf16.mxu0 0
      %1696 = vmatmul.mubr.bf16.gmra.mrb[0].mxu0 %v1605
      %v1697 = vpop.f32.mrb[0].mxu0
      %v1698 = vadd.f32 0.0, %v1697
      %v1699 = vpop.f32.mrb[0].mxu0
      %v1700 = vadd.f32 0.0, %v1699
      %v1701 = vpop.f32.mrb[0].mxu0
      %v1702 = vadd.f32 0.0, %v1701
      %v1703 = vpop.f32.mrb[0].mxu0
      %v1704 = vadd.f32 0.0, %v1703
      %1705 = vmatprep.mubr.bf16.mxu0 0
      %1706 = vmatmul.mubr.bf16.gmra.mrb[0].mxu0 %v1606
      %v1707 = vpop.f32.mrb[0].mxu0
      %v1708 = vadd.f32 0.0, %v1707
      %v1709 = vpop.f32.mrb[0].mxu0
      %v1710 = vadd.f32 0.0, %v1709
      %v1711 = vpop.f32.mrb[0].mxu0
      %v1712 = vadd.f32 0.0, %v1711
      %v1713 = vpop.f32.mrb[0].mxu0
      %v1714 = vadd.f32 0.0, %v1713
      %1715 = vmatprep.mubr.bf16.mxu0 0
      %1716 = vmatmul.mubr.bf16.gmra.mrb[0].mxu0 %v1607
      %v1717 = vpop.f32.mrb[0].mxu0
      %v1718 = vadd.f32 0.0, %v1717
      %v1719 = vpop.f32.mrb[0].mxu0
      %v1720 = vadd.f32 0.0, %v1719
      %v1721 = vpop.f32.mrb[0].mxu0
      %v1722 = vadd.f32 0.0, %v1721
      %v1723 = vpop.f32.mrb[0].mxu0
      %v1724 = vadd.f32 0.0, %v1723
      %1725 = vmatprep.mubr.bf16.mxu0 0
      %1726 = vmatmul.mubr.bf16.gmra.mrb[0].mxu0 %v1608
      %v1727 = vpop.f32.mrb[0].mxu0
      %v1728 = vadd.f32 0.0, %v1727
      %v1729 = vpop.f32.mrb[0].mxu0
      %v1730 = vadd.f32 0.0, %v1729
      %v1731 = vpop.f32.mrb[0].mxu0
      %v1732 = vadd.f32 0.0, %v1731
      %v1733 = vpop.f32.mrb[0].mxu0
      %v1734 = vadd.f32 0.0, %v1733
      %1735 = vmatprep.mubr.bf16.mxu0 0
      %1736 = vmatmul.mubr.bf16.gmra.mrb[0].mxu0 %v1609
      %v1737 = vpop.f32.mrb[0].mxu0
      %v1738 = vadd.f32 0.0, %v1737
      %v1739 = vpop.f32.mrb[0].mxu0
      %v1740 = vadd.f32 0.0, %v1739
      %v1741 = vpop.f32.mrb[0].mxu0
      %v1742 = vadd.f32 0.0, %v1741
      %v1743 = vpop.f32.mrb[0].mxu0
      %v1744 = vadd.f32 0.0, %v1743
      %1745 = vmatprep.mubr.bf16.mxu0 0
      %1746 = vmatmul.mubr.bf16.gmra.mrb[0].mxu0 %v1610
      %v1747 = vpop.f32.mrb[0].mxu0
      %v1748 = vadd.f32 0.0, %v1747
      %v1749 = vpop.f32.mrb[0].mxu0
      %v1750 = vadd.f32 0.0, %v1749
      %v1751 = vpop.f32.mrb[0].mxu0
      %v1752 = vadd.f32 0.0, %v1751
      %v1753 = vpop.f32.mrb[0].mxu0
      %v1754 = vadd.f32 0.0, %v1753
      %1755 = vmatprep.mubr.bf16.mxu0 0
      %1756 = vmatmul.mubr.bf16.gmra.mrb[0].mxu0 %v1611
      %v1757 = vpop.f32.mrb[0].mxu0
      %v1758 = vadd.f32 0.0, %v1757
      %v1759 = vpop.f32.mrb[0].mxu0
      %v1760 = vadd.f32 0.0, %v1759
      %v1761 = vpop.f32.mrb[0].mxu0
      %v1762 = vpop.f32.mrb[0].mxu0
      %1763 = vdwg.mxu0
      %1764 = vst [vmem:[%s255] sm:$0xff] %v1658
      %vm1765 = vcmask 556032
      %1766 = vst.msk [vmem:[%s255 + $0x8] sm:$0xff] %vm1765, %v1660
      %1767 = vst [vmem:[%s255 + $0x10] sm:$0xff] %v1662
      %1768 = vst.msk [vmem:[%s255 + $0x18] sm:$0xff] %vm1765, %v1664
      %1769 = vst [vmem:[%s255 + $0x20] sm:$0xff] %v1668
      %1770 = vst.msk [vmem:[%s255 + $0x28] sm:$0xff] %vm1765, %v1670
      %1771 = vst [vmem:[%s255 + $0x30] sm:$0xff] %v1672
      %1772 = vst.msk [vmem:[%s255 + $0x38] sm:$0xff] %vm1765, %v1674
      %1773 = vst [vmem:[%s255 + $0x40] sm:$0xff] %v1678
      %1774 = vst.msk [vmem:[%s255 + $0x48] sm:$0xff] %vm1765, %v1680
      %1775 = vst [vmem:[%s255 + $0x50] sm:$0xff] %v1682
      %1776 = vst.msk [vmem:[%s255 + $0x58] sm:$0xff] %vm1765, %v1684
      %1777 = vst [vmem:[%s255 + $0x60] sm:$0xff] %v1688
      %1778 = vst.msk [vmem:[%s255 + $0x68] sm:$0xff] %vm1765, %v1690
      %1779 = vst [vmem:[%s255 + $0x70] sm:$0xff] %v1692
      %1780 = vst.msk [vmem:[%s255 + $0x78] sm:$0xff] %vm1765, %v1694
      %1781 = vst [vmem:[%s255 + $0x80] sm:$0xff] %v1698
      %1782 = vst.msk [vmem:[%s255 + $0x88] sm:$0xff] %vm1765, %v1700
      %1783 = vst [vmem:[%s255 + $0x90] sm:$0xff] %v1702
      %1784 = vst.msk [vmem:[%s255 + $0x98] sm:$0xff] %vm1765, %v1704
      %1785 = vst [vmem:[%s255 + $0xa0] sm:$0xff] %v1708
      %1786 = vst.msk [vmem:[%s255 + $0xa8] sm:$0xff] %vm1765, %v1710
      %1787 = vst [vmem:[%s255 + $0xb0] sm:$0xff] %v1712
      %1788 = vst.msk [vmem:[%s255 + $0xb8] sm:$0xff] %vm1765, %v1714
      %1789 = vst [vmem:[%s255 + $0xc0] sm:$0xff] %v1718
      %1790 = vst.msk [vmem:[%s255 + $0xc8] sm:$0xff] %vm1765, %v1720
      %1791 = vst [vmem:[%s255 + $0xd0] sm:$0xff] %v1722
      %1792 = vst.msk [vmem:[%s255 + $0xd8] sm:$0xff] %vm1765, %v1724
      %1793 = vst [vmem:[%s255 + $0xe0] sm:$0xff] %v1728
      %1794 = vst.msk [vmem:[%s255 + $0xe8] sm:$0xff] %vm1765, %v1730
      %1795 = vst [vmem:[%s255 + $0xf0] sm:$0xff] %v1732
      %1796 = vst.msk [vmem:[%s255 + $0xf8] sm:$0xff] %vm1765, %v1734
      %1797 = vst [vmem:[%s255 + $0x100] sm:$0xff] %v1738
      %1798 = vst.msk [vmem:[%s255 + $0x108] sm:$0xff] %vm1765, %v1740
      %1799 = vst [vmem:[%s255 + $0x110] sm:$0xff] %v1742
      %1800 = vst.msk [vmem:[%s255 + $0x118] sm:$0xff] %vm1765, %v1744
      %1801 = vst [vmem:[%s255 + $0x120] sm:$0xff] %v1748
      %1802 = vst.msk [vmem:[%s255 + $0x128] sm:$0xff] %vm1765, %v1750
      %1803 = vst [vmem:[%s255 + $0x130] sm:$0xff] %v1752
      %1804 = vst.msk [vmem:[%s255 + $0x138] sm:$0xff] %vm1765, %v1754
      %1805 = vst [vmem:[%s255 + $0x140] sm:$0xff] %v1758
      %1806 = vst.msk [vmem:[%s255 + $0x148] sm:$0xff] %vm1765, %v1760
      %s1807 = smul.u32 21, %s17
      %p1808 = scmp.lt.s32.totalorder %s1807, 83
      %s1809 = scalar_select %p1808, %s1807, 83
      %s1810 = smul.addr %s1809, 2
      %s1811 = smul.addr %s1810, 8
      %s1812 = scalar_lea.vmem %s6, %s1811
      // Predicated region
      $region49: #{tpu_custom_call.1} parent=43 // pred_check
        %p1813 = pneg %p166
      $region50: #{tpu_custom_call.1} parent=43 // pred_check_branch
        %1815 = sbr.rel (%p1813) target = $region52
      $region51: #{tpu_custom_call.1} parent=43 // pred_region
        %s1816 = smul.u32 21, %s17
      $region52: #{tpu_custom_call.1} parent=43 // pred_fallthru
        _
    $region44: #{tpu_custom_call.1} parent=5 // pred_fallthru
      _
    %p1817 = scmp.le.s32.totalorder 2, %s12
    // Predicated region
    $region53: #{tpu_custom_call.1} parent=5 // pred_check
      %p1818 = pneg %p1817
    $region54: #{tpu_custom_call.1} parent=5 // pred_check_branch
      %1820 = sbr.rel (%p1818) target = $region56
    $region55: #{tpu_custom_call.1} parent=5 // pred_region
      %s1821 = ssub.s32 %s12, 2
      // Predicated region
      $region57: #{tpu_custom_call.1} parent=55 // pred_check
        %p1822 = pneg %p172
      $region58: #{tpu_custom_call.1} parent=55 // pred_check_branch
        %1824 = sbr.rel (%p1822) target = $region60
      $region59: #{tpu_custom_call.1} parent=55 // pred_region
        %s1825 = smul.u32 21, %s18
        %p1826 = scmp.lt.s32.totalorder %s1825, 83
        %s1827 = scalar_select %p1826, %s1825, 83
        %s1828 = smul.addr %s1827, 2
        %s1829 = smul.addr %s1828, 8
        %s1830 = scalar_lea.vmem %s6, %s1829
      $region60: #{tpu_custom_call.1} parent=55 // pred_fallthru
        _
    $region56: #{tpu_custom_call.1} parent=5 // pred_fallthru
      _
  $region6: #{tpu_custom_call.1} parent=0 // loop_footer
    %s16 = sadd.s32 1, %s12
  $region7: #{tpu_custom_call.1} parent=0 // loop_footer_branch
    %11 = sbr.rel target = $region3
  $region8: #{tpu_custom_call.1} parent=0 // loop_exit
    _

</llo_original>
